<compile_context>
chip_gen: v7x
topology: tpu7x:2x2x1
jax: 0.10.0
libtpu: 0.0.40
codegen_flags: <defaults>
</compile_context>

<pallas_src>
import functools

import jax
import jax.numpy as jnp
from jax.experimental import pallas as pl
from jax.experimental.pallas import tpu as pltpu


def _round_up(x: int, n: int) -> int:
    return ((x + n - 1) // n) * n


def _cdiv(a: int, b: int) -> int:
    return -(-a // b)


# Detect once whether this JAX supports single-buffered BlockSpecs.
try:
    pl.BlockSpec((8, 128), lambda i: (0, 0), pipeline_mode=pl.Buffered(1))
    _SINGLE_BUFFER_OK = True
except Exception:  # older JAX: fall back to default (double-buffered) specs
    _SINGLE_BUFFER_OK = False


def _resident_spec(shape):
    """Full-array block with a constant index_map -> stays VMEM-resident
    across all grid steps; single-buffered when supported (never re-DMA'd)."""
    idx = lambda i: (0,) * len(shape)
    if _SINGLE_BUFFER_OK:
        return pl.BlockSpec(shape, idx, pipeline_mode=pl.Buffered(1))
    return pl.BlockSpec(shape, idx)


def _linear_shortcut_kernel(
    x1_ref, x2_ref,          # [TILE_M, in_f] each (row tiles)
    wi1, wi2, b_in,          # [in_f, Hp] x2, [1, Hp]   (b_ipa1 + b_ipa2 pre-summed)
    w1a, b1a, w1b, b1b,      # lin1 block   [Hp, Hp], [1, Hp]
    w2a, b2a, w2b, b2b,      # lin2 block
    w3, b3,                  # lin3 head    [Hp, out_p], [1, out_p]
    out_ref,                 # [TILE_M, out_p]
    *, mxu_dtype,
):
    f32 = jnp.float32

    def dot(a, w_ref):
        # MXU matmul; operands optionally bf16 (v6e/v7x), accumulation f32.
        return jnp.dot(a.astype(mxu_dtype), w_ref[...], preferred_element_type=f32)

    # Input projection: ipa_linear1(x1) + ipa_linear2(x2)
    x = dot(x1_ref[...], wi1) + dot(x2_ref[...], wi2) + b_in[...]

    def residual_block(x, wa, ba, wb, bb):
        h = jnp.maximum(x, 0.0)                 # ReLU
        h = dot(h, wa) + ba[...]
        h = jnp.maximum(h, 0.0)                 # ReLU
        h = dot(h, wb) + bb[...]
        return x + h                            # shortcut

    x = residual_block(x, w1a, b1a, w1b, b1b)   # x + lin1(x)
    x = residual_block(x, w2a, b2a, w2b, b2b)   # x + lin2(x)

    h = jnp.maximum(x, 0.0)                     # lin3 = ReLU -> Linear
    y = dot(h, w3) + b3[...]
    out_ref[...] = y.astype(out_ref.dtype)


def linear_with_shortcut(x1, x2, params, *, tile_m=512, mxu_dtype=None):
    """x1, x2: [batch, seq, in_features].  Returns [batch, seq, out_features]."""
    batch, seq, in_f = x1.shape
    hidden = params["w1a"].shape[0]
    out_f = params["w3"].shape[1]
    dtype = x1.dtype
    m = batch * seq

    if mxu_dtype is None:
        mxu_dtype = jnp.float32  # use jnp.bfloat16 on v6e/v7x when tolerance allows

    x1f = x1.reshape(m, in_f)
    x2f = x2.reshape(m, in_f)

    # ---- Lane-dense hidden: zero-pad hidden to a multiple of 128. ----------
    # Zero weight rows/cols + zero bias cols stay exactly zero through every
    # ReLU->Linear stage, so the padded result is bit-identical on real cols.
    hp = _round_up(hidden, 128)
    # Tiny output heads are NOT padded (8x write inflation + slice pass costs
    # more than the masked store it avoids); wide heads round up to 128.
    out_p = _round_up(out_f, 128) if out_f >= 128 else out_f

    def pad2(w, rows, cols, dt):
        return jnp.pad(w, ((0, rows - w.shape[0]), (0, cols - w.shape[1]))).astype(dt)

    wdt, f32 = mxu_dtype, jnp.float32
    weights = (
        pad2(params["w_ipa1"], in_f, hp, wdt),
        pad2(params["w_ipa2"], in_f, hp, wdt),
        pad2(params["b_ipa1"] + params["b_ipa2"], 1, hp, f32),
        pad2(params["w1a"], hp, hp, wdt), pad2(params["b1a"], 1, hp, f32),
        pad2(params["w1b"], hp, hp, wdt), pad2(params["b1b"], 1, hp, f32),
        pad2(params["w2a"], hp, hp, wdt), pad2(params["b2a"], 1, hp, f32),
        pad2(params["w2b"], hp, hp, wdt), pad2(params["b2b"], 1, hp, f32),
        pad2(params["w3"], hp, out_p, wdt), pad2(params["b3"], 1, out_p, f32),
    )

    # ---- Per-generation VMEM budget (v5e/v6e: 128 MiB, v7x: 64 MiB). -------
    try:
        phys_vmem = int(pltpu.get_tpu_info().vmem_capacity_bytes)
    except Exception:
        phys_vmem = 64 * 1024 * 1024  # conservative (v7x-sized) fallback
    vmem_budget = int(phys_vmem * 3 // 4)

    w_itemsize = jnp.dtype(wdt).itemsize
    wbuf = 1 if _SINGLE_BUFFER_OK else 2
    weight_bytes = wbuf * ((2 * in_f * hp + 4 * hp * hp + hp * out_p) * w_itemsize
                           + (6 * hp + out_p) * 4)

    def vmem_estimate(tm):
        act_in = 2 * 2 * tm * in_f * 4      # x1, x2 tiles, double-buffered (f32)
        act_out = 2 * tm * out_p * 4        # output tile, double-buffered
        live = 4 * tm * hp * 4              # x/h live pairs + cast copies headroom
        return weight_bytes + act_in + act_out + live

    # ---- Adaptive row tiling: >=2 tiles (v7x megacore), minimal M padding, -
    # ---- and back-off until the VMEM estimate fits the per-chip budget. ----
    n_min = 2 if m > 8 else 1
    tm = min(tile_m, _round_up(_cdiv(m, n_min), 8))
    while tm > 8 and vmem_estimate(tm) > vmem_budget:
        tm = _round_up(tm // 2, 8)
    n_tiles = max(_cdiv(m, tm), n_min)
    tm = _round_up(_cdiv(m, n_tiles), 8)    # rebalance: even load, minimal pad
    m_pad = n_tiles * tm

    if m_pad != m:
        x1f = jnp.pad(x1f, ((0, m_pad - m), (0, 0)))
        x2f = jnp.pad(x2f, ((0, m_pad - m), (0, 0)))

    in_specs = [
        pl.BlockSpec((tm, in_f), lambda i: (i, 0)),   # x1 row tile
        pl.BlockSpec((tm, in_f), lambda i: (i, 0)),   # x2 row tile
    ] + [_resident_spec(w.shape) for w in weights]
    out_spec = pl.BlockSpec((tm, out_p), lambda i: (i, 0))

    vmem_limit = int(min(max(2 * vmem_estimate(tm), 32 * 1024 * 1024), vmem_budget))

    out = pl.pallas_call(
        functools.partial(_linear_shortcut_kernel, mxu_dtype=mxu_dtype),
        out_shape=jax.ShapeDtypeStruct((m_pad, out_p), dtype),
        grid=(n_tiles,),
        in_specs=in_specs,
        out_specs=out_spec,
        compiler_params=pltpu.CompilerParams(
            dimension_semantics=("parallel",),   # v7x: shard row tiles over 2 TCs
            vmem_limit_bytes=vmem_limit,
        ),
    )(x1f, x2f, *weights)

    if m_pad != m or out_p != out_f:
        out = out[:m, :out_f]
    return out.reshape(batch, seq, out_f)


def init_params(key, in_features, hidden_features, out_features, dtype=jnp.float32):
    """Deterministic synthetic init (PyTorch-Linear-like uniform ranges).

    Weights stored as (in, out) = transpose of torch's nn.Linear.weight;
    biases stored as (1, out)."""
    def linear(key, fan_in, fan_out):
        kw, kb = jax.random.split(key)
        bound = 1.0 / jnp.sqrt(jnp.float32(fan_in))
        w = jax.random.uniform(kw, (fan_in, fan_out), dtype, -bound, bound)
        b = jax.random.uniform(kb, (1, fan_out), dtype, -bound, bound)
        return w, b

    keys = jax.random.split(key, 8)
    p = {}
    p["w_ipa1"], p["b_ipa1"] = linear(keys[0], in_features, hidden_features)
    p["w_ipa2"], p["b_ipa2"] = linear(keys[1], in_features, hidden_features)
    p["w1a"], p["b1a"] = linear(keys[2], hidden_features, hidden_features)
    p["w1b"], p["b1b"] = linear(keys[3], hidden_features, hidden_features)
    p["w2a"], p["b2a"] = linear(keys[4], hidden_features, hidden_features)
    p["w2b"], p["b2b"] = linear(keys[5], hidden_features, hidden_features)
    p["w3"], p["b3"] = linear(keys[6], hidden_features, out_features)
    return p


def _reference(x1, x2, p):
    """Pure-JAX reference of the PyTorch forward."""
    relu = lambda t: jnp.maximum(t, 0.0)
    x = (x1 @ p["w_ipa1"] + p["b_ipa1"]) + (x2 @ p["w_ipa2"] + p["b_ipa2"])
    x = x + (relu(relu(x) @ p["w1a"] + p["b1a"]) @ p["w1b"] + p["b1b"])
    x = x + (relu(relu(x) @ p["w2a"] + p["b2a"]) @ p["w2b"] + p["b2b"])
    return relu(x) @ p["w3"] + p["b3"]


if __name__ == "__main__":
    in_features, hidden_features, out_features = 32, 32, 16
    batch, seq = 2, 8

    key = jax.random.PRNGKey(0)
    k1, k2, kp = jax.random.split(key, 3)
    x1 = jax.random.normal(k1, (batch, seq, in_features), jnp.float32)
    x2 = jax.random.normal(k2, (batch, seq, in_features), jnp.float32)
    params = init_params(kp, in_features, hidden_features, out_features)

    ref = _reference(x1, x2, params)

    # f32 MXU path (default): matches PyTorch within 1e-4.
    out = jax.block_until_ready(linear_with_shortcut(x1, x2, params))
    assert out.shape == (batch, seq, out_features)
    assert jnp.allclose(out, ref, atol=1e-4, rtol=1e-4)

    # bf16-input MXU path (recommended on v6e/v7x): f32 accumulation, looser tol.
    out_bf16 = jax.block_until_ready(
        linear_with_shortcut(x1, x2, params, mxu_dtype=jnp.bfloat16))
    assert jnp.allclose(out_bf16, ref, atol=1e-1, rtol=1e-1)

    print("KERNEL_OK")
</pallas_src>

<mosaic_0001>
module attributes {stable_mosaic.version = 11 : i64} {
  func.func @_linear_shortcut_kernel(%arg0: i32, %arg1: memref<8x32xf32, #tpu.memory_space<vmem>>, %arg2: memref<8x32xf32, #tpu.memory_space<vmem>>, %arg3: memref<32x128xf32, #tpu.memory_space<vmem>>, %arg4: memref<32x128xf32, #tpu.memory_space<vmem>>, %arg5: memref<1x128xf32, #tpu.memory_space<vmem>>, %arg6: memref<128x128xf32, #tpu.memory_space<vmem>>, %arg7: memref<1x128xf32, #tpu.memory_space<vmem>>, %arg8: memref<128x128xf32, #tpu.memory_space<vmem>>, %arg9: memref<1x128xf32, #tpu.memory_space<vmem>>, %arg10: memref<128x128xf32, #tpu.memory_space<vmem>>, %arg11: memref<1x128xf32, #tpu.memory_space<vmem>>, %arg12: memref<128x128xf32, #tpu.memory_space<vmem>>, %arg13: memref<1x128xf32, #tpu.memory_space<vmem>>, %arg14: memref<128x16xf32, #tpu.memory_space<vmem>>, %arg15: memref<1x16xf32, #tpu.memory_space<vmem>>, %arg16: memref<8x16xf32, #tpu.memory_space<vmem>>) attributes {dimension_semantics = [#tpu.dimension_semantics<parallel>], iteration_bounds = array<i64: 2>, scalar_prefetch = 0 : i64, scratch_operands = 0 : i64, tpu.core_type = #tpu.core_type<tc>, window_params = [{transform_indices = @transform_0, window_bounds = array<i64: 8, 32>}, {transform_indices = @transform_1, window_bounds = array<i64: 8, 32>}, {pipeline_mode = #tpu.pipeline_mode<synchronous>, transform_indices = @transform_2, window_bounds = array<i64: 32, 128>}, {pipeline_mode = #tpu.pipeline_mode<synchronous>, transform_indices = @transform_3, window_bounds = array<i64: 32, 128>}, {pipeline_mode = #tpu.pipeline_mode<synchronous>, transform_indices = @transform_4, window_bounds = array<i64: 1, 128>}, {pipeline_mode = #tpu.pipeline_mode<synchronous>, transform_indices = @transform_5, window_bounds = array<i64: 128, 128>}, {pipeline_mode = #tpu.pipeline_mode<synchronous>, transform_indices = @transform_6, window_bounds = array<i64: 1, 128>}, {pipeline_mode = #tpu.pipeline_mode<synchronous>, transform_indices = @transform_7, window_bounds = array<i64: 128, 128>}, {pipeline_mode = #tpu.pipeline_mode<synchronous>, transform_indices = @transform_8, window_bounds = array<i64: 1, 128>}, {pipeline_mode = #tpu.pipeline_mode<synchronous>, transform_indices = @transform_9, window_bounds = array<i64: 128, 128>}, {pipeline_mode = #tpu.pipeline_mode<synchronous>, transform_indices = @transform_10, window_bounds = array<i64: 1, 128>}, {pipeline_mode = #tpu.pipeline_mode<synchronous>, transform_indices = @transform_11, window_bounds = array<i64: 128, 128>}, {pipeline_mode = #tpu.pipeline_mode<synchronous>, transform_indices = @transform_12, window_bounds = array<i64: 1, 128>}, {pipeline_mode = #tpu.pipeline_mode<synchronous>, transform_indices = @transform_13, window_bounds = array<i64: 128, 16>}, {pipeline_mode = #tpu.pipeline_mode<synchronous>, transform_indices = @transform_14, window_bounds = array<i64: 1, 16>}, {transform_indices = @transform_15, window_bounds = array<i64: 8, 16>}]} {
    %c0 = arith.constant 0 : index
    %c0_0 = arith.constant 0 : index
    %0 = vector.load %arg1[%c0, %c0_0] : memref<8x32xf32, #tpu.memory_space<vmem>>, vector<8x32xf32>
    %c0_1 = arith.constant 0 : index
    %c0_2 = arith.constant 0 : index
    %1 = vector.load %arg3[%c0_1, %c0_2] : memref<32x128xf32, #tpu.memory_space<vmem>>, vector<32x128xf32>
    %cst = arith.constant dense<0.000000e+00> : vector<8x128xf32>
    %2 = tpu.matmul %0, %1, %cst {dimension_numbers = #tpu.dot_dimension_numbers<[1], [0], [0], [1], [0, 0, 1, 1], [], []>} : vector<8x32xf32>, vector<32x128xf32>, vector<8x128xf32> -> vector<8x128xf32>
    %c0_3 = arith.constant 0 : index
    %c0_4 = arith.constant 0 : index
    %3 = vector.load %arg2[%c0_3, %c0_4] : memref<8x32xf32, #tpu.memory_space<vmem>>, vector<8x32xf32>
    %c0_5 = arith.constant 0 : index
    %c0_6 = arith.constant 0 : index
    %4 = vector.load %arg4[%c0_5, %c0_6] : memref<32x128xf32, #tpu.memory_space<vmem>>, vector<32x128xf32>
    %cst_7 = arith.constant dense<0.000000e+00> : vector<8x128xf32>
    %5 = tpu.matmul %3, %4, %cst_7 {dimension_numbers = #tpu.dot_dimension_numbers<[1], [0], [0], [1], [0, 0, 1, 1], [], []>} : vector<8x32xf32>, vector<32x128xf32>, vector<8x128xf32> -> vector<8x128xf32>
    %6 = arith.addf %2, %5 : vector<8x128xf32>
    %c0_8 = arith.constant 0 : index
    %c0_9 = arith.constant 0 : index
    %7 = vector.load %arg5[%c0_8, %c0_9] : memref<1x128xf32, #tpu.memory_space<vmem>>, vector<1x128xf32>
    %8 = vector.broadcast %7 : vector<1x128xf32> to vector<8x128xf32>
    %9 = arith.addf %6, %8 : vector<8x128xf32>
    %cst_10 = arith.constant 0.000000e+00 : f32
    %10 = vector.broadcast %cst_10 : f32 to vector<8x128xf32>
    %11 = arith.maximumf %9, %10 : vector<8x128xf32>
    %c0_11 = arith.constant 0 : index
    %c0_12 = arith.constant 0 : index
    %12 = vector.load %arg6[%c0_11, %c0_12] : memref<128x128xf32, #tpu.memory_space<vmem>>, vector<128x128xf32>
    %cst_13 = arith.constant dense<0.000000e+00> : vector<8x128xf32>
    %13 = tpu.matmul %11, %12, %cst_13 {dimension_numbers = #tpu.dot_dimension_numbers<[1], [0], [0], [1], [0, 0, 1, 1], [], []>} : vector<8x128xf32>, vector<128x128xf32>, vector<8x128xf32> -> vector<8x128xf32>
    %c0_14 = arith.constant 0 : index
    %c0_15 = arith.constant 0 : index
    %14 = vector.load %arg7[%c0_14, %c0_15] : memref<1x128xf32, #tpu.memory_space<vmem>>, vector<1x128xf32>
    %15 = vector.broadcast %14 : vector<1x128xf32> to vector<8x128xf32>
    %16 = arith.addf %13, %15 : vector<8x128xf32>
    %cst_16 = arith.constant 0.000000e+00 : f32
    %17 = vector.broadcast %cst_16 : f32 to vector<8x128xf32>
    %18 = arith.maximumf %16, %17 : vector<8x128xf32>
    %c0_17 = arith.constant 0 : index
    %c0_18 = arith.constant 0 : index
    %19 = vector.load %arg8[%c0_17, %c0_18] : memref<128x128xf32, #tpu.memory_space<vmem>>, vector<128x128xf32>
    %cst_19 = arith.constant dense<0.000000e+00> : vector<8x128xf32>
    %20 = tpu.matmul %18, %19, %cst_19 {dimension_numbers = #tpu.dot_dimension_numbers<[1], [0], [0], [1], [0, 0, 1, 1], [], []>} : vector<8x128xf32>, vector<128x128xf32>, vector<8x128xf32> -> vector<8x128xf32>
    %c0_20 = arith.constant 0 : index
    %c0_21 = arith.constant 0 : index
    %21 = vector.load %arg9[%c0_20, %c0_21] : memref<1x128xf32, #tpu.memory_space<vmem>>, vector<1x128xf32>
    %22 = vector.broadcast %21 : vector<1x128xf32> to vector<8x128xf32>
    %23 = arith.addf %20, %22 : vector<8x128xf32>
    %24 = arith.addf %9, %23 : vector<8x128xf32>
    %cst_22 = arith.constant 0.000000e+00 : f32
    %25 = vector.broadcast %cst_22 : f32 to vector<8x128xf32>
    %26 = arith.maximumf %24, %25 : vector<8x128xf32>
    %c0_23 = arith.constant 0 : index
    %c0_24 = arith.constant 0 : index
    %27 = vector.load %arg10[%c0_23, %c0_24] : memref<128x128xf32, #tpu.memory_space<vmem>>, vector<128x128xf32>
    %cst_25 = arith.constant dense<0.000000e+00> : vector<8x128xf32>
    %28 = tpu.matmul %26, %27, %cst_25 {dimension_numbers = #tpu.dot_dimension_numbers<[1], [0], [0], [1], [0, 0, 1, 1], [], []>} : vector<8x128xf32>, vector<128x128xf32>, vector<8x128xf32> -> vector<8x128xf32>
    %c0_26 = arith.constant 0 : index
    %c0_27 = arith.constant 0 : index
    %29 = vector.load %arg11[%c0_26, %c0_27] : memref<1x128xf32, #tpu.memory_space<vmem>>, vector<1x128xf32>
    %30 = vector.broadcast %29 : vector<1x128xf32> to vector<8x128xf32>
    %31 = arith.addf %28, %30 : vector<8x128xf32>
    %cst_28 = arith.constant 0.000000e+00 : f32
    %32 = vector.broadcast %cst_28 : f32 to vector<8x128xf32>
    %33 = arith.maximumf %31, %32 : vector<8x128xf32>
    %c0_29 = arith.constant 0 : index
    %c0_30 = arith.constant 0 : index
    %34 = vector.load %arg12[%c0_29, %c0_30] : memref<128x128xf32, #tpu.memory_space<vmem>>, vector<128x128xf32>
    %cst_31 = arith.constant dense<0.000000e+00> : vector<8x128xf32>
    %35 = tpu.matmul %33, %34, %cst_31 {dimension_numbers = #tpu.dot_dimension_numbers<[1], [0], [0], [1], [0, 0, 1, 1], [], []>} : vector<8x128xf32>, vector<128x128xf32>, vector<8x128xf32> -> vector<8x128xf32>
    %c0_32 = arith.constant 0 : index
    %c0_33 = arith.constant 0 : index
    %36 = vector.load %arg13[%c0_32, %c0_33] : memref<1x128xf32, #tpu.memory_space<vmem>>, vector<1x128xf32>
    %37 = vector.broadcast %36 : vector<1x128xf32> to vector<8x128xf32>
    %38 = arith.addf %35, %37 : vector<8x128xf32>
    %39 = arith.addf %24, %38 : vector<8x128xf32>
    %cst_34 = arith.constant 0.000000e+00 : f32
    %40 = vector.broadcast %cst_34 : f32 to vector<8x128xf32>
    %41 = arith.maximumf %39, %40 : vector<8x128xf32>
    %c0_35 = arith.constant 0 : index
    %c0_36 = arith.constant 0 : index
    %42 = vector.load %arg14[%c0_35, %c0_36] : memref<128x16xf32, #tpu.memory_space<vmem>>, vector<128x16xf32>
    %cst_37 = arith.constant dense<0.000000e+00> : vector<8x16xf32>
    %43 = tpu.matmul %41, %42, %cst_37 {dimension_numbers = #tpu.dot_dimension_numbers<[1], [0], [0], [1], [0, 0, 1, 1], [], []>} : vector<8x128xf32>, vector<128x16xf32>, vector<8x16xf32> -> vector<8x16xf32>
    %c0_38 = arith.constant 0 : index
    %c0_39 = arith.constant 0 : index
    %44 = vector.load %arg15[%c0_38, %c0_39] : memref<1x16xf32, #tpu.memory_space<vmem>>, vector<1x16xf32>
    %45 = vector.broadcast %44 : vector<1x16xf32> to vector<8x16xf32>
    %46 = arith.addf %43, %45 : vector<8x16xf32>
    %c0_40 = arith.constant 0 : index
    %c0_41 = arith.constant 0 : index
    %47 = vector.load %arg16[%c0_40, %c0_41] : memref<8x16xf32, #tpu.memory_space<vmem>>, vector<8x16xf32>
    tpu.vector_store %arg16[%c0_40, %c0_41], %46 {strides = array<i32>} : memref<8x16xf32, #tpu.memory_space<vmem>>, vector<8x16xf32>,
    return
  }
  func.func @transform_0(%arg0: i32) -> (i32, i32) {
    %c0_i32 = arith.constant 0 : i32
    %c0_i32_0 = arith.constant 0 : i32
    return %arg0, %c0_i32 : i32, i32
  }
  func.func @transform_1(%arg0: i32) -> (i32, i32) {
    %c0_i32 = arith.constant 0 : i32
    %c0_i32_0 = arith.constant 0 : i32
    return %arg0, %c0_i32 : i32, i32
  }
  func.func @transform_2(%arg0: i32) -> (i32, i32) {
    %c0_i32 = arith.constant 0 : i32
    %c0_i32_0 = arith.constant 0 : i32
    %c0_i32_1 = arith.constant 0 : i32
    return %c0_i32, %c0_i32_0 : i32, i32
  }
  func.func @transform_3(%arg0: i32) -> (i32, i32) {
    %c0_i32 = arith.constant 0 : i32
    %c0_i32_0 = arith.constant 0 : i32
    %c0_i32_1 = arith.constant 0 : i32
    return %c0_i32, %c0_i32_0 : i32, i32
  }
  func.func @transform_4(%arg0: i32) -> (i32, i32) {
    %c0_i32 = arith.constant 0 : i32
    %c0_i32_0 = arith.constant 0 : i32
    %c0_i32_1 = arith.constant 0 : i32
    return %c0_i32, %c0_i32_0 : i32, i32
  }
  func.func @transform_5(%arg0: i32) -> (i32, i32) {
    %c0_i32 = arith.constant 0 : i32
    %c0_i32_0 = arith.constant 0 : i32
    %c0_i32_1 = arith.constant 0 : i32
    return %c0_i32, %c0_i32_0 : i32, i32
  }
  func.func @transform_6(%arg0: i32) -> (i32, i32) {
    %c0_i32 = arith.constant 0 : i32
    %c0_i32_0 = arith.constant 0 : i32
    %c0_i32_1 = arith.constant 0 : i32
    return %c0_i32, %c0_i32_0 : i32, i32
  }
  func.func @transform_7(%arg0: i32) -> (i32, i32) {
    %c0_i32 = arith.constant 0 : i32
    %c0_i32_0 = arith.constant 0 : i32
    %c0_i32_1 = arith.constant 0 : i32
    return %c0_i32, %c0_i32_0 : i32, i32
  }
  func.func @transform_8(%arg0: i32) -> (i32, i32) {
    %c0_i32 = arith.constant 0 : i32
    %c0_i32_0 = arith.constant 0 : i32
    %c0_i32_1 = arith.constant 0 : i32
    return %c0_i32, %c0_i32_0 : i32, i32
  }
  func.func @transform_9(%arg0: i32) -> (i32, i32) {
    %c0_i32 = arith.constant 0 : i32
    %c0_i32_0 = arith.constant 0 : i32
    %c0_i32_1 = arith.constant 0 : i32
    return %c0_i32, %c0_i32_0 : i32, i32
  }
  func.func @transform_10(%arg0: i32) -> (i32, i32) {
    %c0_i32 = arith.constant 0 : i32
    %c0_i32_0 = arith.constant 0 : i32
    %c0_i32_1 = arith.constant 0 : i32
    return %c0_i32, %c0_i32_0 : i32, i32
  }
  func.func @transform_11(%arg0: i32) -> (i32, i32) {
    %c0_i32 = arith.constant 0 : i32
    %c0_i32_0 = arith.constant 0 : i32
    %c0_i32_1 = arith.constant 0 : i32
    return %c0_i32, %c0_i32_0 : i32, i32
  }
  func.func @transform_12(%arg0: i32) -> (i32, i32) {
    %c0_i32 = arith.constant 0 : i32
    %c0_i32_0 = arith.constant 0 : i32
    %c0_i32_1 = arith.constant 0 : i32
    return %c0_i32, %c0_i32_0 : i32, i32
  }
  func.func @transform_13(%arg0: i32) -> (i32, i32) {
    %c0_i32 = arith.constant 0 : i32
    %c0_i32_0 = arith.constant 0 : i32
    %c0_i32_1 = arith.constant 0 : i32
    return %c0_i32, %c0_i32_0 : i32, i32
  }
  func.func @transform_14(%arg0: i32) -> (i32, i32) {
    %c0_i32 = arith.constant 0 : i32
    %c0_i32_0 = arith.constant 0 : i32
    %c0_i32_1 = arith.constant 0 : i32
    return %c0_i32, %c0_i32_0 : i32, i32
  }
  func.func @transform_15(%arg0: i32) -> (i32, i32) {
    %c0_i32 = arith.constant 0 : i32
    %c0_i32_0 = arith.constant 0 : i32
    return %arg0, %c0_i32 : i32, i32
  }
}

</mosaic_0001>

<llo_original>
// kernel: tpu_custom_call.1
$region0: #{tpu_custom_call.1}
  #allocation0 [shape = 'u32[]', space=smem, size = 0x4, offset = 0x4, fixed_abs, tag = 'smem constant byte address 0x4 - core index']
  #allocation1 [shape = 'u32[144,128]{1,0:T(1,128)}', space=vmem, size = 0x12000, scoped, tag = 'internal scratch']
  %s0 = inlined_call_operand.hbm [shape: f32[16,32], index: 0, kind: input, shape index: {}]
  %s1 = inlined_call_operand.hbm [shape: f32[16,32], index: 1, kind: input, shape index: {}]
  %s2 = inlined_call_operand.vmem [shape: f32[32,128], index: 2, kind: input, shape index: {}]
  %s3 = inlined_call_operand.hbm [shape: f32[32,128], index: 3, kind: input, shape index: {}]
  %s4 = inlined_call_operand.vmem [shape: f32[1,128], index: 4, kind: input, shape index: {}]
  %s5 = inlined_call_operand.vmem [shape: f32[128,128], index: 5, kind: input, shape index: {}]
  %s6 = inlined_call_operand.vmem [shape: f32[1,128], index: 6, kind: input, shape index: {}]
  %s7 = inlined_call_operand.hbm [shape: f32[128,128], index: 7, kind: input, shape index: {}]
  %s8 = inlined_call_operand.hbm [shape: f32[1,128], index: 8, kind: input, shape index: {}]
  %s9 = inlined_call_operand.hbm [shape: f32[128,128], index: 9, kind: input, shape index: {}]
  %s10 = inlined_call_operand.vmem [shape: f32[1,128], index: 10, kind: input, shape index: {}]
  %s11 = inlined_call_operand.hbm [shape: f32[128,128], index: 11, kind: input, shape index: {}]
  %s12 = inlined_call_operand.vmem [shape: f32[1,128], index: 12, kind: input, shape index: {}]
  %s13 = inlined_call_operand.vmem [shape: f32[128,16], index: 13, kind: input, shape index: {}]
  %s14 = inlined_call_operand.vmem [shape: f32[1,16], index: 14, kind: input, shape index: {}]
  %s15 = inlined_call_operand.hbm [shape: f32[16,16], index: 15, kind: output, shape index: {}]
  %s16 = sld [smem:[#allocation0]]
  $region121: #{tpu_custom_call.1} parent=0
    _
  %s18 = ssub.s32 1, %s16
  %s19 = scalar_select 0, %s18, %s16
  $region1: #{tpu_custom_call.1} parent=0
    #allocation2 [shape = 'u8[8192]{0}', space=vmem, size = 0x2000, scoped, tag = 'input window, operand 0']
    #allocation3 [shape = 's32[2]{0}', space=sflag, size = 0x8, scoped, tag = 'scoped memory for tpu_custom_call.1']
    #allocation4 [shape = 's32[2]{0}', space=sflag, size = 0x8, scoped, tag = 'scoped memory for tpu_custom_call.1']
    #allocation5 [shape = 'u8[8192]{0}', space=vmem, size = 0x2000, scoped, tag = 'input window, operand 1']
    #allocation6 [shape = 's32[2]{0}', space=sflag, size = 0x8, scoped, tag = 'scoped memory for tpu_custom_call.1']
    #allocation7 [shape = 'u8[16384]{0}', space=vmem, size = 0x4000, scoped, tag = 'input window, operand 3, single buffered']
    #allocation8 [shape = 'u8[65536]{0}', space=vmem, size = 0x10000, scoped, tag = 'input window, operand 7, single buffered']
    #allocation9 [shape = 's32[1]{0}', space=sflag, size = 0x4, scoped, tag = 'scoped memory for tpu_custom_call.1']
    #allocation10 [shape = 'u8[512]{0}', space=vmem, size = 0x400, scoped, tag = 'input window, operand 8, single buffered']
    #allocation11 [shape = 'u8[65536]{0}', space=vmem, size = 0x10000, scoped, tag = 'input window, operand 9, single buffered']
    #allocation12 [shape = 's32[1]{0}', space=sflag, size = 0x4, scoped, tag = 'scoped memory for tpu_custom_call.1']
    #allocation13 [shape = 'u8[65536]{0}', space=vmem, size = 0x10000, scoped, tag = 'input window, operand 11, single buffered']
    #allocation14 [shape = 'u8[8192]{0}', space=vmem, size = 0x2000, scoped, tag = 'output window, operand 0']
    %20 = vsyncpa [#allocation3], 0
    %s21 = scalar_lea.sflag [#allocation3], 1
    %22 = vsyncpa %s21, 0
    %23 = vsyncpa [#allocation6], 0
    %s24 = scalar_lea.sflag [#allocation6], 1
    %25 = vsyncpa %s24, 0
    %26 = vsyncpa [#allocation9], 0
    %27 = vsyncpa [#allocation12], 0
    %28 = vsyncpa [#allocation4], 0
    %s29 = scalar_lea.sflag [#allocation4], 1
    %30 = vsyncpa %s29, 0
    loop: start=0, step=1, limit=4
    $region2: #{tpu_custom_call.1} parent=1 // loop_pre_header
      _
    $region3: #{tpu_custom_call.1} parent=1 // loop_header
      %s32 = sphi 0, %s36
      %p33 = scmp.ge.s32.totalorder %s32, 4
      %s42 = sphi 0, %s44
      %s45 = sphi 0, %s42
      %s46 = sphi 0, %s45
      %s62 = sphi 0, %s46
      %s68 = sphi 0, %s70
      %s71 = sphi 0, %s68
      %s72 = sphi 0, %s71
      %s88 = sphi 0, %s72
      %s92 = sphi 0, %s92
      %s94 = sphi 0, %s92
      %s95 = sphi 0, %s94
      %s109 = sphi 0, %s95
      %s113 = sphi 0, %s113
      %s115 = sphi 0, %s113
      %s116 = sphi 0, %s115
      %s130 = sphi 0, %s116
      %s134 = sphi 0, %s134
      %s136 = sphi 0, %s134
      %s137 = sphi 0, %s136
      %s151 = sphi 0, %s137
      %s155 = sphi 0, %s155
      %s157 = sphi 0, %s155
      %s158 = sphi 0, %s157
      %s172 = sphi 0, %s158
      %s176 = sphi 0, %s176
      %s178 = sphi 0, %s176
      %s179 = sphi 0, %s178
      %s193 = sphi 0, %s179
      %s197 = sphi 0, %s197
      %s199 = sphi 0, %s197
      %s200 = sphi 0, %s199
      %s214 = sphi 0, %s200
      %s218 = sphi 0, %s218
      %s220 = sphi 0, %s218
      %s221 = sphi 0, %s220
      %s235 = sphi 0, %s221
      %s239 = sphi 0, %s239
      %s241 = sphi 0, %s239
      %s242 = sphi 0, %s241
      %s256 = sphi 0, %s242
      %s260 = sphi 0, %s260
      %s262 = sphi 0, %s260
      %s263 = sphi 0, %s262
      %s277 = sphi 0, %s263
      %s281 = sphi 0, %s281
      %s283 = sphi 0, %s281
      %s284 = sphi 0, %s283
      %s298 = sphi 0, %s284
      %s302 = sphi 0, %s302
      %s304 = sphi 0, %s302
      %s305 = sphi 0, %s304
      %s319 = sphi 0, %s305
      %s323 = sphi 0, %s323
      %s325 = sphi 0, %s323
      %s326 = sphi 0, %s325
      %s340 = sphi 0, %s326
      %s344 = sphi 0, %s344
      %s346 = sphi 0, %s344
      %s347 = sphi 0, %s346
      %s361 = sphi 0, %s347
      %s367 = sphi 0, %s369
      %s370 = sphi 0, %s367
      %s371 = sphi 0, %s370
      %s387 = sphi 0, %s371
    $region4: #{tpu_custom_call.1} parent=1 // loop_header_branch
      %35 = sbr.rel (%p33) target = $region8
    $region5: #{tpu_custom_call.1} parent=1 // loop_body
      %s37 = ssub.s32 %s32, 1
      %s38 = ssub.s32 %s32, 2
      %s39 = sadd.s32 %s32, 1
      %s40 = ssub.s32 %s32, %s39
      %p41 = scmp.eq.s32.totalorder %s40, 0
      %s43 = sadd.s32 %s42, 1
      %s44 = scalar_select %p41, %s42, %s43
      %p47 = pneg %p41
      %p48 = scmp.eq.s32.totalorder %s32, 1
      %p49 = por %p47, %p48
      %p50 = scmp.ne.s32.totalorder %s42, %s45
      %p51 = scmp.eq.s32.totalorder %s32, 0
      %p52 = por %p50, %p51
      %p53 = scmp.ne.s32.totalorder %s42, %s45
      %p54 = scmp.eq.s32.totalorder %s37, 1
      %p55 = por %p53, %p54
      %p56 = scmp.ne.s32.totalorder %s45, %s46
      %p57 = scmp.eq.s32.totalorder %s37, 0
      %p58 = por %p56, %p57
      %p59 = scmp.ne.s32.totalorder %s45, %s46
      %p60 = scmp.eq.s32.totalorder %s38, 1
      %p61 = por %p59, %p60
      %p63 = scmp.ne.s32.totalorder %s46, %s62
      %p64 = scmp.eq.s32.totalorder %s38, 0
      %p65 = por %p63, %p64
      %s66 = ssub.s32 %s32, %s39
      %p67 = scmp.eq.s32.totalorder %s66, 0
      %s69 = sadd.s32 %s68, 1
      %s70 = scalar_select %p67, %s68, %s69
      %p73 = pneg %p67
      %p74 = scmp.eq.s32.totalorder %s32, 1
      %p75 = por %p73, %p74
      %p76 = scmp.ne.s32.totalorder %s68, %s71
      %p77 = scmp.eq.s32.totalorder %s32, 0
      %p78 = por %p76, %p77
      %p79 = scmp.ne.s32.totalorder %s68, %s71
      %p80 = scmp.eq.s32.totalorder %s37, 1
      %p81 = por %p79, %p80
      %p82 = scmp.ne.s32.totalorder %s71, %s72
      %p83 = scmp.eq.s32.totalorder %s37, 0
      %p84 = por %p82, %p83
      %p85 = scmp.ne.s32.totalorder %s71, %s72
      %p86 = scmp.eq.s32.totalorder %s38, 1
      %p87 = por %p85, %p86
      %p89 = scmp.ne.s32.totalorder %s72, %s88
      %p90 = scmp.eq.s32.totalorder %s38, 0
      %p91 = por %p89, %p90
      %s93 = sadd.s32 %s92, 1
      %p96 = scmp.eq.s32.totalorder %s32, 1
      %p97 = scmp.ne.s32.totalorder %s92, %s94
      %p98 = scmp.eq.s32.totalorder %s32, 0
      %p99 = por %p97, %p98
      %p100 = scmp.ne.s32.totalorder %s92, %s94
      %p101 = scmp.eq.s32.totalorder %s37, 1
      %p102 = por %p100, %p101
      %p103 = scmp.ne.s32.totalorder %s94, %s95
      %p104 = scmp.eq.s32.totalorder %s37, 0
      %p105 = por %p103, %p104
      %p106 = scmp.ne.s32.totalorder %s94, %s95
      %p107 = scmp.eq.s32.totalorder %s38, 1
      %p108 = por %p106, %p107
      %p110 = scmp.ne.s32.totalorder %s95, %s109
      %p111 = scmp.eq.s32.totalorder %s38, 0
      %p112 = por %p110, %p111
      %s114 = sadd.s32 %s113, 1
      %p117 = scmp.eq.s32.totalorder %s32, 1
      %p118 = scmp.ne.s32.totalorder %s113, %s115
      %p119 = scmp.eq.s32.totalorder %s32, 0
      %p120 = por %p118, %p119
      %p121 = scmp.ne.s32.totalorder %s113, %s115
      %p122 = scmp.eq.s32.totalorder %s37, 1
      %p123 = por %p121, %p122
      %p124 = scmp.ne.s32.totalorder %s115, %s116
      %p125 = scmp.eq.s32.totalorder %s37, 0
      %p126 = por %p124, %p125
      %p127 = scmp.ne.s32.totalorder %s115, %s116
      %p128 = scmp.eq.s32.totalorder %s38, 1
      %p129 = por %p127, %p128
      %p131 = scmp.ne.s32.totalorder %s116, %s130
      %p132 = scmp.eq.s32.totalorder %s38, 0
      %p133 = por %p131, %p132
      %s135 = sadd.s32 %s134, 1
      %p138 = scmp.eq.s32.totalorder %s32, 1
      %p139 = scmp.ne.s32.totalorder %s134, %s136
      %p140 = scmp.eq.s32.totalorder %s32, 0
      %p141 = por %p139, %p140
      %p142 = scmp.ne.s32.totalorder %s134, %s136
      %p143 = scmp.eq.s32.totalorder %s37, 1
      %p144 = por %p142, %p143
      %p145 = scmp.ne.s32.totalorder %s136, %s137
      %p146 = scmp.eq.s32.totalorder %s37, 0
      %p147 = por %p145, %p146
      %p148 = scmp.ne.s32.totalorder %s136, %s137
      %p149 = scmp.eq.s32.totalorder %s38, 1
      %p150 = por %p148, %p149
      %p152 = scmp.ne.s32.totalorder %s137, %s151
      %p153 = scmp.eq.s32.totalorder %s38, 0
      %p154 = por %p152, %p153
      %s156 = sadd.s32 %s155, 1
      %p159 = scmp.eq.s32.totalorder %s32, 1
      %p160 = scmp.ne.s32.totalorder %s155, %s157
      %p161 = scmp.eq.s32.totalorder %s32, 0
      %p162 = por %p160, %p161
      %p163 = scmp.ne.s32.totalorder %s155, %s157
      %p164 = scmp.eq.s32.totalorder %s37, 1
      %p165 = por %p163, %p164
      %p166 = scmp.ne.s32.totalorder %s157, %s158
      %p167 = scmp.eq.s32.totalorder %s37, 0
      %p168 = por %p166, %p167
      %p169 = scmp.ne.s32.totalorder %s157, %s158
      %p170 = scmp.eq.s32.totalorder %s38, 1
      %p171 = por %p169, %p170
      %p173 = scmp.ne.s32.totalorder %s158, %s172
      %p174 = scmp.eq.s32.totalorder %s38, 0
      %p175 = por %p173, %p174
      %s177 = sadd.s32 %s176, 1
      %p180 = scmp.eq.s32.totalorder %s32, 1
      %p181 = scmp.ne.s32.totalorder %s176, %s178
      %p182 = scmp.eq.s32.totalorder %s32, 0
      %p183 = por %p181, %p182
      %p184 = scmp.ne.s32.totalorder %s176, %s178
      %p185 = scmp.eq.s32.totalorder %s37, 1
      %p186 = por %p184, %p185
      %p187 = scmp.ne.s32.totalorder %s178, %s179
      %p188 = scmp.eq.s32.totalorder %s37, 0
      %p189 = por %p187, %p188
      %p190 = scmp.ne.s32.totalorder %s178, %s179
      %p191 = scmp.eq.s32.totalorder %s38, 1
      %p192 = por %p190, %p191
      %p194 = scmp.ne.s32.totalorder %s179, %s193
      %p195 = scmp.eq.s32.totalorder %s38, 0
      %p196 = por %p194, %p195
      %s198 = sadd.s32 %s197, 1
      %p201 = scmp.eq.s32.totalorder %s32, 1
      %p202 = scmp.ne.s32.totalorder %s197, %s199
      %p203 = scmp.eq.s32.totalorder %s32, 0
      %p204 = por %p202, %p203
      %p205 = scmp.ne.s32.totalorder %s197, %s199
      %p206 = scmp.eq.s32.totalorder %s37, 1
      %p207 = por %p205, %p206
      %p208 = scmp.ne.s32.totalorder %s199, %s200
      %p209 = scmp.eq.s32.totalorder %s37, 0
      %p210 = por %p208, %p209
      %p211 = scmp.ne.s32.totalorder %s199, %s200
      %p212 = scmp.eq.s32.totalorder %s38, 1
      %p213 = por %p211, %p212
      %p215 = scmp.ne.s32.totalorder %s200, %s214
      %p216 = scmp.eq.s32.totalorder %s38, 0
      %p217 = por %p215, %p216
      %s219 = sadd.s32 %s218, 1
      %p222 = scmp.eq.s32.totalorder %s32, 1
      %p223 = scmp.ne.s32.totalorder %s218, %s220
      %p224 = scmp.eq.s32.totalorder %s32, 0
      %p225 = por %p223, %p224
      %p226 = scmp.ne.s32.totalorder %s218, %s220
      %p227 = scmp.eq.s32.totalorder %s37, 1
      %p228 = por %p226, %p227
      %p229 = scmp.ne.s32.totalorder %s220, %s221
      %p230 = scmp.eq.s32.totalorder %s37, 0
      %p231 = por %p229, %p230
      %p232 = scmp.ne.s32.totalorder %s220, %s221
      %p233 = scmp.eq.s32.totalorder %s38, 1
      %p234 = por %p232, %p233
      %p236 = scmp.ne.s32.totalorder %s221, %s235
      %p237 = scmp.eq.s32.totalorder %s38, 0
      %p238 = por %p236, %p237
      %s240 = sadd.s32 %s239, 1
      %p243 = scmp.eq.s32.totalorder %s32, 1
      %p244 = scmp.ne.s32.totalorder %s239, %s241
      %p245 = scmp.eq.s32.totalorder %s32, 0
      %p246 = por %p244, %p245
      %p247 = scmp.ne.s32.totalorder %s239, %s241
      %p248 = scmp.eq.s32.totalorder %s37, 1
      %p249 = por %p247, %p248
      %p250 = scmp.ne.s32.totalorder %s241, %s242
      %p251 = scmp.eq.s32.totalorder %s37, 0
      %p252 = por %p250, %p251
      %p253 = scmp.ne.s32.totalorder %s241, %s242
      %p254 = scmp.eq.s32.totalorder %s38, 1
      %p255 = por %p253, %p254
      %p257 = scmp.ne.s32.totalorder %s242, %s256
      %p258 = scmp.eq.s32.totalorder %s38, 0
      %p259 = por %p257, %p258
      %s261 = sadd.s32 %s260, 1
      %p264 = scmp.eq.s32.totalorder %s32, 1
      %p265 = scmp.ne.s32.totalorder %s260, %s262
      %p266 = scmp.eq.s32.totalorder %s32, 0
      %p267 = por %p265, %p266
      %p268 = scmp.ne.s32.totalorder %s260, %s262
      %p269 = scmp.eq.s32.totalorder %s37, 1
      %p270 = por %p268, %p269
      %p271 = scmp.ne.s32.totalorder %s262, %s263
      %p272 = scmp.eq.s32.totalorder %s37, 0
      %p273 = por %p271, %p272
      %p274 = scmp.ne.s32.totalorder %s262, %s263
      %p275 = scmp.eq.s32.totalorder %s38, 1
      %p276 = por %p274, %p275
      %p278 = scmp.ne.s32.totalorder %s263, %s277
      %p279 = scmp.eq.s32.totalorder %s38, 0
      %p280 = por %p278, %p279
      %s282 = sadd.s32 %s281, 1
      %p285 = scmp.eq.s32.totalorder %s32, 1
      %p286 = scmp.ne.s32.totalorder %s281, %s283
      %p287 = scmp.eq.s32.totalorder %s32, 0
      %p288 = por %p286, %p287
      %p289 = scmp.ne.s32.totalorder %s281, %s283
      %p290 = scmp.eq.s32.totalorder %s37, 1
      %p291 = por %p289, %p290
      %p292 = scmp.ne.s32.totalorder %s283, %s284
      %p293 = scmp.eq.s32.totalorder %s37, 0
      %p294 = por %p292, %p293
      %p295 = scmp.ne.s32.totalorder %s283, %s284
      %p296 = scmp.eq.s32.totalorder %s38, 1
      %p297 = por %p295, %p296
      %p299 = scmp.ne.s32.totalorder %s284, %s298
      %p300 = scmp.eq.s32.totalorder %s38, 0
      %p301 = por %p299, %p300
      %s303 = sadd.s32 %s302, 1
      %p306 = scmp.eq.s32.totalorder %s32, 1
      %p307 = scmp.ne.s32.totalorder %s302, %s304
      %p308 = scmp.eq.s32.totalorder %s32, 0
      %p309 = por %p307, %p308
      %p310 = scmp.ne.s32.totalorder %s302, %s304
      %p311 = scmp.eq.s32.totalorder %s37, 1
      %p312 = por %p310, %p311
      %p313 = scmp.ne.s32.totalorder %s304, %s305
      %p314 = scmp.eq.s32.totalorder %s37, 0
      %p315 = por %p313, %p314
      %p316 = scmp.ne.s32.totalorder %s304, %s305
      %p317 = scmp.eq.s32.totalorder %s38, 1
      %p318 = por %p316, %p317
      %p320 = scmp.ne.s32.totalorder %s305, %s319
      %p321 = scmp.eq.s32.totalorder %s38, 0
      %p322 = por %p320, %p321
      %s324 = sadd.s32 %s323, 1
      %p327 = scmp.eq.s32.totalorder %s32, 1
      %p328 = scmp.ne.s32.totalorder %s323, %s325
      %p329 = scmp.eq.s32.totalorder %s32, 0
      %p330 = por %p328, %p329
      %p331 = scmp.ne.s32.totalorder %s323, %s325
      %p332 = scmp.eq.s32.totalorder %s37, 1
      %p333 = por %p331, %p332
      %p334 = scmp.ne.s32.totalorder %s325, %s326
      %p335 = scmp.eq.s32.totalorder %s37, 0
      %p336 = por %p334, %p335
      %p337 = scmp.ne.s32.totalorder %s325, %s326
      %p338 = scmp.eq.s32.totalorder %s38, 1
      %p339 = por %p337, %p338
      %p341 = scmp.ne.s32.totalorder %s326, %s340
      %p342 = scmp.eq.s32.totalorder %s38, 0
      %p343 = por %p341, %p342
      %s345 = sadd.s32 %s344, 1
      %p348 = scmp.eq.s32.totalorder %s32, 1
      %p349 = scmp.ne.s32.totalorder %s344, %s346
      %p350 = scmp.eq.s32.totalorder %s32, 0
      %p351 = por %p349, %p350
      %p352 = scmp.ne.s32.totalorder %s344, %s346
      %p353 = scmp.eq.s32.totalorder %s37, 1
      %p354 = por %p352, %p353
      %p355 = scmp.ne.s32.totalorder %s346, %s347
      %p356 = scmp.eq.s32.totalorder %s37, 0
      %p357 = por %p355, %p356
      %p358 = scmp.ne.s32.totalorder %s346, %s347
      %p359 = scmp.eq.s32.totalorder %s38, 1
      %p360 = por %p358, %p359
      %p362 = scmp.ne.s32.totalorder %s347, %s361
      %p363 = scmp.eq.s32.totalorder %s38, 0
      %p364 = por %p362, %p363
      %s365 = ssub.s32 %s32, %s39
      %p366 = scmp.eq.s32.totalorder %s365, 0
      %s368 = sadd.s32 %s367, 1
      %s369 = scalar_select %p366, %s367, %s368
      %p372 = pneg %p366
      %p373 = scmp.eq.s32.totalorder %s32, 1
      %p374 = por %p372, %p373
      %p375 = scmp.ne.s32.totalorder %s367, %s370
      %p376 = scmp.eq.s32.totalorder %s32, 0
      %p377 = por %p375, %p376
      %p378 = scmp.ne.s32.totalorder %s367, %s370
      %p379 = scmp.eq.s32.totalorder %s37, 1
      %p380 = por %p378, %p379
      %p381 = scmp.ne.s32.totalorder %s370, %s371
      %p382 = scmp.eq.s32.totalorder %s37, 0
      %p383 = por %p381, %p382
      %p384 = scmp.ne.s32.totalorder %s370, %s371
      %p385 = scmp.eq.s32.totalorder %s38, 1
      %p386 = por %p384, %p385
      %p388 = scmp.ne.s32.totalorder %s371, %s387
      %p389 = scmp.eq.s32.totalorder %s38, 0
      %p390 = por %p388, %p389
      %p391 = scmp.le.s32.totalorder 1, %s32
      %p392 = scmp.lt.s32.totalorder %s32, 3
      %p393 = pnand %p391, %p392
      %p394 = pneg %p393
      // Predicated region
      $region9: #{tpu_custom_call.1} parent=5 // pred_check
        _
      $region10: #{tpu_custom_call.1} parent=5 // pred_check_branch
        %396 = sbr.rel (%p393) target = $region12
      $region11: #{tpu_custom_call.1} parent=5 // pred_region
        %s397 = ssub.s32 %s32, 1
        // Predicated region
        $region13: #{tpu_custom_call.1} parent=11 // pred_check
          %p398 = pneg %p105
        $region14: #{tpu_custom_call.1} parent=11 // pred_check_branch
          %400 = sbr.rel (%p398) target = $region16
        $region15: #{tpu_custom_call.1} parent=11 // pred_region
          _
        $region16: #{tpu_custom_call.1} parent=11 // pred_fallthru
          _
        // Predicated region
        $region17: #{tpu_custom_call.1} parent=11 // pred_check
          %p401 = pneg %p126
        $region18: #{tpu_custom_call.1} parent=11 // pred_check_branch
          %403 = sbr.rel (%p401) target = $region20
        $region19: #{tpu_custom_call.1} parent=11 // pred_region
          %s405 = ssub.s32 512, 512
          %406 = vsyncadd [#allocation6], %s405
          %s407 = sshll.u32 [#allocation7], 4
          %s408 = int_to_ptr.vmem [resolvable:$true] %s407
          %413 = dma.hbm_to_vmem [thread:$0]  %s3, 512, %s408, [#allocation6], 128, 128, 8
        $region20: #{tpu_custom_call.1} parent=11 // pred_fallthru
          _
        // Predicated region
        $region21: #{tpu_custom_call.1} parent=11 // pred_check
          %p414 = pneg %p147
        $region22: #{tpu_custom_call.1} parent=11 // pred_check_branch
          %416 = sbr.rel (%p414) target = $region24
        $region23: #{tpu_custom_call.1} parent=11 // pred_region
          _
        $region24: #{tpu_custom_call.1} parent=11 // pred_fallthru
          _
        // Predicated region
        $region25: #{tpu_custom_call.1} parent=11 // pred_check
          %p417 = pneg %p168
        $region26: #{tpu_custom_call.1} parent=11 // pred_check_branch
          %419 = sbr.rel (%p417) target = $region28
        $region27: #{tpu_custom_call.1} parent=11 // pred_region
          _
        $region28: #{tpu_custom_call.1} parent=11 // pred_fallthru
          _
        // Predicated region
        $region29: #{tpu_custom_call.1} parent=11 // pred_check
          %p420 = pneg %p189
        $region30: #{tpu_custom_call.1} parent=11 // pred_check_branch
          %422 = sbr.rel (%p420) target = $region32
        $region31: #{tpu_custom_call.1} parent=11 // pred_region
          _
        $region32: #{tpu_custom_call.1} parent=11 // pred_fallthru
          _
        // Predicated region
        $region33: #{tpu_custom_call.1} parent=11 // pred_check
          %p423 = pneg %p210
        $region34: #{tpu_custom_call.1} parent=11 // pred_check_branch
          %425 = sbr.rel (%p423) target = $region36
        $region35: #{tpu_custom_call.1} parent=11 // pred_region
          %s427 = ssub.s32 2048, 2048
          %428 = vsyncadd [#allocation9], %s427
          %s429 = sshll.u32 [#allocation8], 4
          %s430 = int_to_ptr.vmem [resolvable:$true] %s429
          %435 = dma.hbm_to_vmem [thread:$0]  %s7, 2048, %s430, [#allocation9], 128, 128, 8
        $region36: #{tpu_custom_call.1} parent=11 // pred_fallthru
          _
        // Predicated region
        $region37: #{tpu_custom_call.1} parent=11 // pred_check
          %p436 = pneg %p231
        $region38: #{tpu_custom_call.1} parent=11 // pred_check_branch
          %438 = sbr.rel (%p436) target = $region40
        $region39: #{tpu_custom_call.1} parent=11 // pred_region
          %s440 = ssub.s32 16, 16
          %441 = vsyncadd [#allocation9], %s440
          %s443 = sshll.u32 [#allocation10], 4
          %s444 = int_to_ptr.vmem [resolvable:$true] %s443
          %446 = dma.hbm_to_vmem [thread:$0]  %s8, 16, %s444, [#allocation9]
        $region40: #{tpu_custom_call.1} parent=11 // pred_fallthru
          _
        // Predicated region
        $region41: #{tpu_custom_call.1} parent=11 // pred_check
          %p447 = pneg %p252
        $region42: #{tpu_custom_call.1} parent=11 // pred_check_branch
          %449 = sbr.rel (%p447) target = $region44
        $region43: #{tpu_custom_call.1} parent=11 // pred_region
          %s451 = ssub.s32 2048, 2048
          %452 = vsyncadd [#allocation12], %s451
          %s453 = sshll.u32 [#allocation11], 4
          %s454 = int_to_ptr.vmem [resolvable:$true] %s453
          %459 = dma.hbm_to_vmem [thread:$0]  %s9, 2048, %s454, [#allocation12], 128, 128, 8
        $region44: #{tpu_custom_call.1} parent=11 // pred_fallthru
          _
        // Predicated region
        $region45: #{tpu_custom_call.1} parent=11 // pred_check
          %p460 = pneg %p273
        $region46: #{tpu_custom_call.1} parent=11 // pred_check_branch
          %462 = sbr.rel (%p460) target = $region48
        $region47: #{tpu_custom_call.1} parent=11 // pred_region
          _
        $region48: #{tpu_custom_call.1} parent=11 // pred_fallthru
          _
        // Predicated region
        $region49: #{tpu_custom_call.1} parent=11 // pred_check
          %p463 = pneg %p294
        $region50: #{tpu_custom_call.1} parent=11 // pred_check_branch
          %465 = sbr.rel (%p463) target = $region52
        $region51: #{tpu_custom_call.1} parent=11 // pred_region
          %s467 = ssub.s32 2048, 2048
          %468 = vsyncadd [#allocation12], %s467
          %s469 = sshll.u32 [#allocation13], 4
          %s470 = int_to_ptr.vmem [resolvable:$true] %s469
          %475 = dma.hbm_to_vmem [thread:$0]  %s11, 2048, %s470, [#allocation12], 128, 128, 8
        $region52: #{tpu_custom_call.1} parent=11 // pred_fallthru
          _
        // Predicated region
        $region53: #{tpu_custom_call.1} parent=11 // pred_check
          %p476 = pneg %p315
        $region54: #{tpu_custom_call.1} parent=11 // pred_check_branch
          %478 = sbr.rel (%p476) target = $region56
        $region55: #{tpu_custom_call.1} parent=11 // pred_region
          _
        $region56: #{tpu_custom_call.1} parent=11 // pred_fallthru
          _
        // Predicated region
        $region57: #{tpu_custom_call.1} parent=11 // pred_check
          %p479 = pneg %p336
        $region58: #{tpu_custom_call.1} parent=11 // pred_check_branch
          %481 = sbr.rel (%p479) target = $region60
        $region59: #{tpu_custom_call.1} parent=11 // pred_region
          _
        $region60: #{tpu_custom_call.1} parent=11 // pred_fallthru
          _
        // Predicated region
        $region61: #{tpu_custom_call.1} parent=11 // pred_check
          %p482 = pneg %p357
        $region62: #{tpu_custom_call.1} parent=11 // pred_check_branch
          %484 = sbr.rel (%p482) target = $region64
        $region63: #{tpu_custom_call.1} parent=11 // pred_region
          _
        $region64: #{tpu_custom_call.1} parent=11 // pred_fallthru
          _
      $region12: #{tpu_custom_call.1} parent=5 // pred_fallthru
        _
      %p485 = scmp.lt.s32.totalorder %s32, 2
      // Predicated region
      $region65: #{tpu_custom_call.1} parent=5 // pred_check
        %p486 = pneg %p485
      $region66: #{tpu_custom_call.1} parent=5 // pred_check_branch
        %488 = sbr.rel (%p486) target = $region68
      $region67: #{tpu_custom_call.1} parent=5 // pred_region
        // Predicated region
        $region69: #{tpu_custom_call.1} parent=67 // pred_check
          %p489 = pneg %p52
        $region70: #{tpu_custom_call.1} parent=67 // pred_check_branch
          %491 = sbr.rel (%p489) target = $region72
        $region71: #{tpu_custom_call.1} parent=67 // pred_region
          %s492 = sand.u32 %s42, 1
          %s493 = scalar_lea.sflag [#allocation3], %s492
          %s494 = sand.u32 %s42, 1
          %s495 = smul.addr %s494, 8
          %s496 = scalar_lea.vmem [#allocation2], %s495
          %s498 = ssub.s32 128, 128
          %499 = vsyncadd %s493, %s498
          %s500 = smul.addr %s32, 128
          %s501 = scalar_lea.hbm %s0, %s500
          %s503 = sshll.u32 %s496, 4
          %s504 = int_to_ptr.vmem [resolvable:$true] %s503
          %506 = dma.hbm_to_vmem [thread:$0]  %s501, 128, %s504, %s493
        $region72: #{tpu_custom_call.1} parent=67 // pred_fallthru
          _
        // Predicated region
        $region73: #{tpu_custom_call.1} parent=67 // pred_check
          %p507 = pneg %p78
        $region74: #{tpu_custom_call.1} parent=67 // pred_check_branch
          %509 = sbr.rel (%p507) target = $region76
        $region75: #{tpu_custom_call.1} parent=67 // pred_region
          %s510 = sand.u32 %s32, 1
          %s511 = scalar_lea.sflag [#allocation6], %s510
          %s512 = sand.u32 %s68, 1
          %s513 = smul.addr %s512, 8
          %s514 = scalar_lea.vmem [#allocation5], %s513
          %s516 = ssub.s32 128, 128
          %517 = vsyncadd %s511, %s516
          %s518 = smul.addr %s32, 128
          %s519 = scalar_lea.hbm %s1, %s518
          %s521 = sshll.u32 %s514, 4
          %s522 = int_to_ptr.vmem [resolvable:$true] %s521
          %524 = dma.hbm_to_vmem [thread:$0]  %s519, 128, %s522, %s511
        $region76: #{tpu_custom_call.1} parent=67 // pred_fallthru
          _
      $region68: #{tpu_custom_call.1} parent=5 // pred_fallthru
        _
      %p525 = scmp.le.s32.totalorder 1, %s32
      %p526 = scmp.lt.s32.totalorder %s32, 3
      %p527 = pnand %p525, %p526
      %p528 = pneg %p527
      // Predicated region
      $region77: #{tpu_custom_call.1} parent=5 // pred_check
        _
      $region78: #{tpu_custom_call.1} parent=5 // pred_check_branch
        %530 = sbr.rel (%p527) target = $region80
      $region79: #{tpu_custom_call.1} parent=5 // pred_region
        %s531 = ssub.s32 %s32, 1
        %s532 = sand.u32 %s45, 1
        %s533 = scalar_lea.sflag [#allocation3], %s532
        %s534 = sand.u32 %s45, 1
        %s535 = smul.addr %s534, 8
        %s536 = scalar_lea.vmem [#allocation2], %s535
        // Predicated region
        $region81: #{tpu_custom_call.1} parent=79 // pred_check
          %p537 = pneg %p58
        $region82: #{tpu_custom_call.1} parent=79 // pred_check_branch
          %539 = sbr.rel (%p537) target = $region84
        $region83: #{tpu_custom_call.1} parent=79 // pred_region
          %540 = dma.done %s533, 128
        $region84: #{tpu_custom_call.1} parent=79 // pred_fallthru
          _
        %s541 = sand.u32 %s37, 1
        %s542 = scalar_lea.sflag [#allocation6], %s541
        %s543 = sand.u32 %s71, 1
        %s544 = smul.addr %s543, 8
        %s545 = scalar_lea.vmem [#allocation5], %s544
        // Predicated region
        $region85: #{tpu_custom_call.1} parent=79 // pred_check
          %p546 = pneg %p84
        $region86: #{tpu_custom_call.1} parent=79 // pred_check_branch
          %548 = sbr.rel (%p546) target = $region88
        $region87: #{tpu_custom_call.1} parent=79 // pred_region
          %549 = dma.done %s542, 128
        $region88: #{tpu_custom_call.1} parent=79 // pred_fallthru
          _
        // Predicated region
        $region89: #{tpu_custom_call.1} parent=79 // pred_check
          %p550 = pneg %p126
        $region90: #{tpu_custom_call.1} parent=79 // pred_check_branch
          %552 = sbr.rel (%p550) target = $region92
        $region91: #{tpu_custom_call.1} parent=79 // pred_region
          %553 = dma.done [#allocation6], 512
        $region92: #{tpu_custom_call.1} parent=79 // pred_fallthru
          _
        // Predicated region
        $region93: #{tpu_custom_call.1} parent=79 // pred_check
          %p554 = pneg %p210
        $region94: #{tpu_custom_call.1} parent=79 // pred_check_branch
          %556 = sbr.rel (%p554) target = $region96
        $region95: #{tpu_custom_call.1} parent=79 // pred_region
          %557 = dma.done [#allocation9], 2048
        $region96: #{tpu_custom_call.1} parent=79 // pred_fallthru
          _
        // Predicated region
        $region97: #{tpu_custom_call.1} parent=79 // pred_check
          %p558 = pneg %p231
        $region98: #{tpu_custom_call.1} parent=79 // pred_check_branch
          %560 = sbr.rel (%p558) target = $region100
        $region99: #{tpu_custom_call.1} parent=79 // pred_region
          %561 = dma.done [#allocation9], 16
        $region100: #{tpu_custom_call.1} parent=79 // pred_fallthru
          _
        // Predicated region
        $region101: #{tpu_custom_call.1} parent=79 // pred_check
          %p562 = pneg %p252
        $region102: #{tpu_custom_call.1} parent=79 // pred_check_branch
          %564 = sbr.rel (%p562) target = $region104
        $region103: #{tpu_custom_call.1} parent=79 // pred_region
          %565 = dma.done [#allocation12], 2048
        $region104: #{tpu_custom_call.1} parent=79 // pred_fallthru
          _
        // Predicated region
        $region105: #{tpu_custom_call.1} parent=79 // pred_check
          %p566 = pneg %p294
        $region106: #{tpu_custom_call.1} parent=79 // pred_check_branch
          %568 = sbr.rel (%p566) target = $region108
        $region107: #{tpu_custom_call.1} parent=79 // pred_region
          %569 = dma.done [#allocation12], 2048
        $region108: #{tpu_custom_call.1} parent=79 // pred_fallthru
          _
        %s570 = sand.u32 %s45, 1
        %s571 = scalar_lea.sflag [#allocation3], %s570
        %s572 = sand.u32 %s45, 1
        %s573 = smul.addr %s572, 8
        %s574 = scalar_lea.vmem [#allocation2], %s573
        %p575 = pneg %p58
        %p576 = pneg %p55
        %s577 = sand.u32 %s37, 1
        %s578 = scalar_lea.sflag [#allocation6], %s577
        %s579 = sand.u32 %s71, 1
        %s580 = smul.addr %s579, 8
        %s581 = scalar_lea.vmem [#allocation5], %s580
        %p582 = pneg %p84
        %p583 = pneg %p81
        %p584 = pneg %p105
        %p585 = pneg %p102
        %p586 = pneg %p126
        %p587 = pneg %p123
        %p588 = pneg %p147
        %p589 = pneg %p144
        %p590 = pneg %p168
        %p591 = pneg %p165
        %p592 = pneg %p189
        %p593 = pneg %p186
        %p594 = pneg %p210
        %p595 = pneg %p207
        %p596 = pneg %p231
        %p597 = pneg %p228
        %p598 = pneg %p252
        %p599 = pneg %p249
        %p600 = pneg %p273
        %p601 = pneg %p270
        %p602 = pneg %p294
        %p603 = pneg %p291
        %p604 = pneg %p315
        %p605 = pneg %p312
        %p606 = pneg %p336
        %p607 = pneg %p333
        %p608 = pneg %p357
        %p609 = pneg %p354
        %p610 = pneg %p383
        %p611 = pneg %p380
        %s612 = sand.u32 %s370, 1
        %s613 = scalar_lea.sflag [#allocation4], %s612
        %s614 = sand.u32 %s370, 1
        %s615 = smul.addr %s614, 8
        %s616 = scalar_lea.vmem [#allocation14], %s615
        %v617 = vld [vmem:[%s536] sm:$0xff]
        %v618 = vld [vmem:[%s2] sm:$0xff]
        %v619 = vld [vmem:[%s2 + $0x8] sm:$0xff]
        %v620 = vld [vmem:[%s2 + $0x10] sm:$0xff]
        %v621 = vld [vmem:[%s2 + $0x18] sm:$0xff]
        %v622 = vld [vmem:[%s545] sm:$0xff]
        %v623 = vld [vmem:[#allocation7] sm:$0xff]
        %v624 = vld [vmem:[#allocation7 + $0x8] sm:$0xff]
        %v625 = vld [vmem:[#allocation7 + $0x10] sm:$0xff]
        %v626 = vld [vmem:[#allocation7 + $0x18] sm:$0xff]
        %vm627 = vcmask 261120
        %v629 = vsel %vm627, %v622, 0
        %631 = vmatprep.subr.mxu0 0.0
        %632 = vmatpush1.msra.mxu0 %v623
        %633 = vmatprep.subr.mxu0 0.0
        %634 = vmatpush1.msra.mxu0 %v624
        %635 = vmatprep.subr.mxu0 0.0
        %636 = vmatpush1.msra.mxu0 %v625
        %637 = vmatprep.subr.mxu0 0.0
        %638 = vmatpush1.msra.mxu0 %v626
        %639 = vmatprep.subr.mxu0 0.0
        %640 = vmatpush1.msra.mxu0 0.0
        %641 = vmatprep.subr.mxu0 0.0
        %642 = vmatpush1.msra.mxu0 0.0
        %643 = vmatprep.subr.mxu0 0.0
        %644 = vmatpush1.msra.mxu0 0.0
        %645 = vmatprep.subr.mxu0 0.0
        %646 = vmatpush1.msra.mxu0 0.0
        %647 = vmatprep.subr.mxu0 0.0
        %648 = vmatpush1.msra.mxu0 0.0
        %649 = vmatprep.subr.mxu0 0.0
        %650 = vmatpush1.msra.mxu0 0.0
        %651 = vmatprep.subr.mxu0 0.0
        %652 = vmatpush1.msra.mxu0 0.0
        %653 = vmatprep.subr.mxu0 0.0
        %654 = vmatpush1.msra.mxu0 0.0
        %655 = vmatprep.subr.mxu0 0.0
        %656 = vmatpush1.msra.mxu0 0.0
        %657 = vmatprep.subr.mxu0 0.0
        %658 = vmatpush1.msra.mxu0 0.0
        %659 = vmatprep.subr.mxu0 0.0
        %660 = vmatpush1.msra.mxu0 0.0
        %661 = vmatprep.subr.mxu0 0.0
        %662 = vmatpush1.msra.mxu0 0.0
        %663 = vmatprep.subr.mxu0 0.0
        %664 = vmatpush1.msra.mxu0 0.0
        %665 = vmatprep.subr.mxu0 0.0
        %666 = vmatpush1.msra.mxu0 0.0
        %667 = vmatprep.subr.mxu0 0.0
        %668 = vmatpush1.msra.mxu0 0.0
        %669 = vmatprep.subr.mxu0 0.0
        %670 = vmatpush1.msra.mxu0 0.0
        %671 = vmatprep.subr.mxu0 0.0
        %672 = vmatpush1.msra.mxu0 0.0
        %673 = vmatprep.subr.mxu0 0.0
        %674 = vmatpush1.msra.mxu0 0.0
        %675 = vmatprep.subr.mxu0 0.0
        %676 = vmatpush1.msra.mxu0 0.0
        %677 = vmatprep.subr.mxu0 0.0
        %678 = vmatpush1.msra.mxu0 0.0
        %679 = vmatprep.subr.mxu0 0.0
        %680 = vmatpush1.msra.mxu0 0.0
        %681 = vmatprep.subr.mxu0 0.0
        %682 = vmatpush1.msra.mxu0 0.0
        %683 = vmatprep.subr.mxu0 0.0
        %684 = vmatpush1.msra.mxu0 0.0
        %685 = vmatprep.subr.mxu0 0.0
        %686 = vmatpush1.msra.mxu0 0.0
        %687 = vmatprep.subr.mxu0 0.0
        %688 = vmatpush1.msra.mxu0 0.0
        %689 = vmatprep.subr.mxu0 0.0
        %690 = vmatpush1.msra.mxu0 0.0
        %691 = vmatprep.subr.mxu0 0.0
        %692 = vmatpush1.msra.mxu0 0.0
        %693 = vmatprep.subr.mxu0 0.0
        %694 = vmatpush1.msra.mxu0 0.0
        %695 = vmatprep.mubr.f32.mxu0 0.0
        %696 = vmatmul.mubr.f32.gmra.mrb[0].mxu0 %v629
        %v697 = vpop.f32.mrb[0].mxu0
        %v698 = vadd.f32 0.0, %v697
        %v699 = vpop.f32.mrb[0].mxu0
        %700 = vdwg.mxu0
        %v702 = vsel %vm627, %v617, 0
        %704 = vmatprep.subr.mxu0 0.0
        %705 = vmatpush1.msra.mxu0 %v618
        %706 = vmatprep.subr.mxu0 0.0
        %707 = vmatpush1.msra.mxu0 %v619
        %708 = vmatprep.subr.mxu0 0.0
        %709 = vmatpush1.msra.mxu0 %v620
        %710 = vmatprep.subr.mxu0 0.0
        %711 = vmatpush1.msra.mxu0 %v621
        %712 = vmatprep.subr.mxu0 0.0
        %713 = vmatpush1.msra.mxu0 0.0
        %714 = vmatprep.subr.mxu0 0.0
        %715 = vmatpush1.msra.mxu0 0.0
        %716 = vmatprep.subr.mxu0 0.0
        %717 = vmatpush1.msra.mxu0 0.0
        %718 = vmatprep.subr.mxu0 0.0
        %719 = vmatpush1.msra.mxu0 0.0
        %720 = vmatprep.subr.mxu0 0.0
        %721 = vmatpush1.msra.mxu0 0.0
        %722 = vmatprep.subr.mxu0 0.0
        %723 = vmatpush1.msra.mxu0 0.0
        %724 = vmatprep.subr.mxu0 0.0
        %725 = vmatpush1.msra.mxu0 0.0
        %726 = vmatprep.subr.mxu0 0.0
        %727 = vmatpush1.msra.mxu0 0.0
        %728 = vmatprep.subr.mxu0 0.0
        %729 = vmatpush1.msra.mxu0 0.0
        %730 = vmatprep.subr.mxu0 0.0
        %731 = vmatpush1.msra.mxu0 0.0
        %732 = vmatprep.subr.mxu0 0.0
        %733 = vmatpush1.msra.mxu0 0.0
        %734 = vmatprep.subr.mxu0 0.0
        %735 = vmatpush1.msra.mxu0 0.0
        %736 = vmatprep.subr.mxu0 0.0
        %737 = vmatpush1.msra.mxu0 0.0
        %738 = vmatprep.subr.mxu0 0.0
        %739 = vmatpush1.msra.mxu0 0.0
        %740 = vmatprep.subr.mxu0 0.0
        %741 = vmatpush1.msra.mxu0 0.0
        %742 = vmatprep.subr.mxu0 0.0
        %743 = vmatpush1.msra.mxu0 0.0
        %744 = vmatprep.subr.mxu0 0.0
        %745 = vmatpush1.msra.mxu0 0.0
        %746 = vmatprep.subr.mxu0 0.0
        %747 = vmatpush1.msra.mxu0 0.0
        %748 = vmatprep.subr.mxu0 0.0
        %749 = vmatpush1.msra.mxu0 0.0
        %750 = vmatprep.subr.mxu0 0.0
        %751 = vmatpush1.msra.mxu0 0.0
        %752 = vmatprep.subr.mxu0 0.0
        %753 = vmatpush1.msra.mxu0 0.0
        %754 = vmatprep.subr.mxu0 0.0
        %755 = vmatpush1.msra.mxu0 0.0
        %756 = vmatprep.subr.mxu0 0.0
        %757 = vmatpush1.msra.mxu0 0.0
        %758 = vmatprep.subr.mxu0 0.0
        %759 = vmatpush1.msra.mxu0 0.0
        %760 = vmatprep.subr.mxu0 0.0
        %761 = vmatpush1.msra.mxu0 0.0
        %762 = vmatprep.subr.mxu0 0.0
        %763 = vmatpush1.msra.mxu0 0.0
        %764 = vmatprep.subr.mxu0 0.0
        %765 = vmatpush1.msra.mxu0 0.0
        %766 = vmatprep.subr.mxu0 0.0
        %767 = vmatpush1.msra.mxu0 0.0
        %768 = vmatprep.mubr.f32.mxu0 0.0
        %769 = vmatmul.mubr.f32.gmra.mrb[0].mxu0 %v702
        %v770 = vpop.f32.mrb[0].mxu0
        %v771 = vadd.f32 %v698, %v770
        %v772 = vpop.f32.mrb[0].mxu0
        %773 = vdwg.mxu0
        %v774 = vld [vmem:[%s4] sm:$0x1]
        %v776 = vlaneseq
        %v777 = vshrl.u32 %v776, 7
        %v778 = vsub.s32 0, %v777
        %v779 = vrot.slane %v774, %v778
        %v781 = vadd.f32 %v771, %v779
        %v782 = vmax.f32 %v781, 0.0
        %v783 = vld [vmem:[%s5] sm:$0xff]
        %v784 = vld [vmem:[%s5 + $0x8] sm:$0xff]
        %v785 = vld [vmem:[%s5 + $0x10] sm:$0xff]
        %v786 = vld [vmem:[%s5 + $0x18] sm:$0xff]
        %v787 = vld [vmem:[%s5 + $0x20] sm:$0xff]
        %v788 = vld [vmem:[%s5 + $0x28] sm:$0xff]
        %v789 = vld [vmem:[%s5 + $0x30] sm:$0xff]
        %v790 = vld [vmem:[%s5 + $0x38] sm:$0xff]
        %v791 = vld [vmem:[%s5 + $0x40] sm:$0xff]
        %v792 = vld [vmem:[%s5 + $0x48] sm:$0xff]
        %v793 = vld [vmem:[%s5 + $0x50] sm:$0xff]
        %v794 = vld [vmem:[%s5 + $0x58] sm:$0xff]
        %v795 = vld [vmem:[%s5 + $0x60] sm:$0xff]
        %v796 = vld [vmem:[%s5 + $0x68] sm:$0xff]
        %v797 = vld [vmem:[%s5 + $0x70] sm:$0xff]
        %v798 = vld [vmem:[%s5 + $0x78] sm:$0xff]
        %v799 = vld [vmem:[%s6] sm:$0x1]
        %v801 = vlaneseq
        %v802 = vshrl.u32 %v801, 7
        %v803 = vsub.s32 0, %v802
        %v804 = vrot.slane %v799, %v803
        %806 = vmatprep.subr.mxu0 0.0
        %807 = vmatpush1.msra.mxu0 %v783
        %808 = vmatprep.subr.mxu0 0.0
        %809 = vmatpush1.msra.mxu0 %v784
        %810 = vmatprep.subr.mxu0 0.0
        %811 = vmatpush1.msra.mxu0 %v785
        %812 = vmatprep.subr.mxu0 0.0
        %813 = vmatpush1.msra.mxu0 %v786
        %814 = vmatprep.subr.mxu0 0.0
        %815 = vmatpush1.msra.mxu0 %v787
        %816 = vmatprep.subr.mxu0 0.0
        %817 = vmatpush1.msra.mxu0 %v788
        %818 = vmatprep.subr.mxu0 0.0
        %819 = vmatpush1.msra.mxu0 %v789
        %820 = vmatprep.subr.mxu0 0.0
        %821 = vmatpush1.msra.mxu0 %v790
        %822 = vmatprep.subr.mxu0 0.0
        %823 = vmatpush1.msra.mxu0 %v791
        %824 = vmatprep.subr.mxu0 0.0
        %825 = vmatpush1.msra.mxu0 %v792
        %826 = vmatprep.subr.mxu0 0.0
        %827 = vmatpush1.msra.mxu0 %v793
        %828 = vmatprep.subr.mxu0 0.0
        %829 = vmatpush1.msra.mxu0 %v794
        %830 = vmatprep.subr.mxu0 0.0
        %831 = vmatpush1.msra.mxu0 %v795
        %832 = vmatprep.subr.mxu0 0.0
        %833 = vmatpush1.msra.mxu0 %v796
        %834 = vmatprep.subr.mxu0 0.0
        %835 = vmatpush1.msra.mxu0 %v797
        %836 = vmatprep.subr.mxu0 0.0
        %837 = vmatpush1.msra.mxu0 %v798
        %838 = vmatprep.subr.mxu0 0.0
        %839 = vmatpush1.msra.mxu0 0.0
        %840 = vmatprep.subr.mxu0 0.0
        %841 = vmatpush1.msra.mxu0 0.0
        %842 = vmatprep.subr.mxu0 0.0
        %843 = vmatpush1.msra.mxu0 0.0
        %844 = vmatprep.subr.mxu0 0.0
        %845 = vmatpush1.msra.mxu0 0.0
        %846 = vmatprep.subr.mxu0 0.0
        %847 = vmatpush1.msra.mxu0 0.0
        %848 = vmatprep.subr.mxu0 0.0
        %849 = vmatpush1.msra.mxu0 0.0
        %850 = vmatprep.subr.mxu0 0.0
        %851 = vmatpush1.msra.mxu0 0.0
        %852 = vmatprep.subr.mxu0 0.0
        %853 = vmatpush1.msra.mxu0 0.0
        %854 = vmatprep.subr.mxu0 0.0
        %855 = vmatpush1.msra.mxu0 0.0
        %856 = vmatprep.subr.mxu0 0.0
        %857 = vmatpush1.msra.mxu0 0.0
        %858 = vmatprep.subr.mxu0 0.0
        %859 = vmatpush1.msra.mxu0 0.0
        %860 = vmatprep.subr.mxu0 0.0
        %861 = vmatpush1.msra.mxu0 0.0
        %862 = vmatprep.subr.mxu0 0.0
        %863 = vmatpush1.msra.mxu0 0.0
        %864 = vmatprep.subr.mxu0 0.0
        %865 = vmatpush1.msra.mxu0 0.0
        %866 = vmatprep.subr.mxu0 0.0
        %867 = vmatpush1.msra.mxu0 0.0
        %868 = vmatprep.subr.mxu0 0.0
        %869 = vmatpush1.msra.mxu0 0.0
        %870 = vmatprep.mubr.f32.mxu0 0.0
        %871 = vmatmul.mubr.f32.gmra.mrb[0].mxu0 %v782
        %v872 = vpop.f32.mrb[0].mxu0
        %v873 = vadd.f32 %v804, %v872
        %v874 = vpop.f32.mrb[0].mxu0
        %875 = vdwg.mxu0
        %v876 = vmax.f32 %v873, 0.0
        %v877 = vld [vmem:[#allocation8] sm:$0xff]
        %v878 = vld [vmem:[#allocation8 + $0x8] sm:$0xff]
        %v879 = vld [vmem:[#allocation8 + $0x10] sm:$0xff]
        %v880 = vld [vmem:[#allocation8 + $0x18] sm:$0xff]
        %v881 = vld [vmem:[#allocation8 + $0x20] sm:$0xff]
        %v882 = vld [vmem:[#allocation8 + $0x28] sm:$0xff]
        %v883 = vld [vmem:[#allocation8 + $0x30] sm:$0xff]
        %v884 = vld [vmem:[#allocation8 + $0x38] sm:$0xff]
        %v885 = vld [vmem:[#allocation8 + $0x40] sm:$0xff]
        %v886 = vld [vmem:[#allocation8 + $0x48] sm:$0xff]
        %v887 = vld [vmem:[#allocation8 + $0x50] sm:$0xff]
        %v888 = vld [vmem:[#allocation8 + $0x58] sm:$0xff]
        %v889 = vld [vmem:[#allocation8 + $0x60] sm:$0xff]
        %v890 = vld [vmem:[#allocation8 + $0x68] sm:$0xff]
        %v891 = vld [vmem:[#allocation8 + $0x70] sm:$0xff]
        %v892 = vld [vmem:[#allocation8 + $0x78] sm:$0xff]
        %v893 = vld [vmem:[#allocation10] sm:$0x1]
        %v895 = vlaneseq
        %v896 = vshrl.u32 %v895, 7
        %v897 = vsub.s32 0, %v896
        %v898 = vrot.slane %v893, %v897
        %900 = vmatprep.subr.mxu0 0.0
        %901 = vmatpush1.msra.mxu0 %v877
        %902 = vmatprep.subr.mxu0 0.0
        %903 = vmatpush1.msra.mxu0 %v878
        %904 = vmatprep.subr.mxu0 0.0
        %905 = vmatpush1.msra.mxu0 %v879
        %906 = vmatprep.subr.mxu0 0.0
        %907 = vmatpush1.msra.mxu0 %v880
        %908 = vmatprep.subr.mxu0 0.0
        %909 = vmatpush1.msra.mxu0 %v881
        %910 = vmatprep.subr.mxu0 0.0
        %911 = vmatpush1.msra.mxu0 %v882
        %912 = vmatprep.subr.mxu0 0.0
        %913 = vmatpush1.msra.mxu0 %v883
        %914 = vmatprep.subr.mxu0 0.0
        %915 = vmatpush1.msra.mxu0 %v884
        %916 = vmatprep.subr.mxu0 0.0
        %917 = vmatpush1.msra.mxu0 %v885
        %918 = vmatprep.subr.mxu0 0.0
        %919 = vmatpush1.msra.mxu0 %v886
        %920 = vmatprep.subr.mxu0 0.0
        %921 = vmatpush1.msra.mxu0 %v887
        %922 = vmatprep.subr.mxu0 0.0
        %923 = vmatpush1.msra.mxu0 %v888
        %924 = vmatprep.subr.mxu0 0.0
        %925 = vmatpush1.msra.mxu0 %v889
        %926 = vmatprep.subr.mxu0 0.0
        %927 = vmatpush1.msra.mxu0 %v890
        %928 = vmatprep.subr.mxu0 0.0
        %929 = vmatpush1.msra.mxu0 %v891
        %930 = vmatprep.subr.mxu0 0.0
        %931 = vmatpush1.msra.mxu0 %v892
        %932 = vmatprep.subr.mxu0 0.0
        %933 = vmatpush1.msra.mxu0 0.0
        %934 = vmatprep.subr.mxu0 0.0
        %935 = vmatpush1.msra.mxu0 0.0
        %936 = vmatprep.subr.mxu0 0.0
        %937 = vmatpush1.msra.mxu0 0.0
        %938 = vmatprep.subr.mxu0 0.0
        %939 = vmatpush1.msra.mxu0 0.0
        %940 = vmatprep.subr.mxu0 0.0
        %941 = vmatpush1.msra.mxu0 0.0
        %942 = vmatprep.subr.mxu0 0.0
        %943 = vmatpush1.msra.mxu0 0.0
        %944 = vmatprep.subr.mxu0 0.0
        %945 = vmatpush1.msra.mxu0 0.0
        %946 = vmatprep.subr.mxu0 0.0
        %947 = vmatpush1.msra.mxu0 0.0
        %948 = vmatprep.subr.mxu0 0.0
        %949 = vmatpush1.msra.mxu0 0.0
        %950 = vmatprep.subr.mxu0 0.0
        %951 = vmatpush1.msra.mxu0 0.0
        %952 = vmatprep.subr.mxu0 0.0
        %953 = vmatpush1.msra.mxu0 0.0
        %954 = vmatprep.subr.mxu0 0.0
        %955 = vmatpush1.msra.mxu0 0.0
        %956 = vmatprep.subr.mxu0 0.0
        %957 = vmatpush1.msra.mxu0 0.0
        %958 = vmatprep.subr.mxu0 0.0
        %959 = vmatpush1.msra.mxu0 0.0
        %960 = vmatprep.subr.mxu0 0.0
        %961 = vmatpush1.msra.mxu0 0.0
        %962 = vmatprep.subr.mxu0 0.0
        %963 = vmatpush1.msra.mxu0 0.0
        %964 = vmatprep.mubr.f32.mxu0 0.0
        %965 = vmatmul.mubr.f32.gmra.mrb[0].mxu0 %v876
        %v966 = vpop.f32.mrb[0].mxu0
        %v967 = vadd.f32 %v898, %v966
        %v968 = vpop.f32.mrb[0].mxu0
        %969 = vdwg.mxu0
        %v970 = vadd.f32 %v781, %v967
        %v971 = vmax.f32 %v970, 0.0
        %v972 = vld [vmem:[#allocation11] sm:$0xff]
        %v973 = vld [vmem:[#allocation11 + $0x8] sm:$0xff]
        %v974 = vld [vmem:[#allocation11 + $0x10] sm:$0xff]
        %v975 = vld [vmem:[#allocation11 + $0x18] sm:$0xff]
        %v976 = vld [vmem:[#allocation11 + $0x20] sm:$0xff]
        %v977 = vld [vmem:[#allocation11 + $0x28] sm:$0xff]
        %v978 = vld [vmem:[#allocation11 + $0x30] sm:$0xff]
        %v979 = vld [vmem:[#allocation11 + $0x38] sm:$0xff]
        %v980 = vld [vmem:[#allocation11 + $0x40] sm:$0xff]
        %v981 = vld [vmem:[#allocation11 + $0x48] sm:$0xff]
        %v982 = vld [vmem:[#allocation11 + $0x50] sm:$0xff]
        %v983 = vld [vmem:[#allocation11 + $0x58] sm:$0xff]
        %v984 = vld [vmem:[#allocation11 + $0x60] sm:$0xff]
        %v985 = vld [vmem:[#allocation11 + $0x68] sm:$0xff]
        %v986 = vld [vmem:[#allocation11 + $0x70] sm:$0xff]
        %v987 = vld [vmem:[#allocation11 + $0x78] sm:$0xff]
        %v988 = vld [vmem:[%s10] sm:$0x1]
        %v990 = vlaneseq
        %v991 = vshrl.u32 %v990, 7
        %v992 = vsub.s32 0, %v991
        %v993 = vrot.slane %v988, %v992
        %995 = vmatprep.subr.mxu0 0.0
        %996 = vmatpush1.msra.mxu0 %v972
        %997 = vmatprep.subr.mxu0 0.0
        %998 = vmatpush1.msra.mxu0 %v973
        %999 = vmatprep.subr.mxu0 0.0
        %1000 = vmatpush1.msra.mxu0 %v974
        %1001 = vmatprep.subr.mxu0 0.0
        %1002 = vmatpush1.msra.mxu0 %v975
        %1003 = vmatprep.subr.mxu0 0.0
        %1004 = vmatpush1.msra.mxu0 %v976
        %1005 = vmatprep.subr.mxu0 0.0
        %1006 = vmatpush1.msra.mxu0 %v977
        %1007 = vmatprep.subr.mxu0 0.0
        %1008 = vmatpush1.msra.mxu0 %v978
        %1009 = vmatprep.subr.mxu0 0.0
        %1010 = vmatpush1.msra.mxu0 %v979
        %1011 = vmatprep.subr.mxu0 0.0
        %1012 = vmatpush1.msra.mxu0 %v980
        %1013 = vmatprep.subr.mxu0 0.0
        %1014 = vmatpush1.msra.mxu0 %v981
        %1015 = vmatprep.subr.mxu0 0.0
        %1016 = vmatpush1.msra.mxu0 %v982
        %1017 = vmatprep.subr.mxu0 0.0
        %1018 = vmatpush1.msra.mxu0 %v983
        %1019 = vmatprep.subr.mxu0 0.0
        %1020 = vmatpush1.msra.mxu0 %v984
        %1021 = vmatprep.subr.mxu0 0.0
        %1022 = vmatpush1.msra.mxu0 %v985
        %1023 = vmatprep.subr.mxu0 0.0
        %1024 = vmatpush1.msra.mxu0 %v986
        %1025 = vmatprep.subr.mxu0 0.0
        %1026 = vmatpush1.msra.mxu0 %v987
        %1027 = vmatprep.subr.mxu0 0.0
        %1028 = vmatpush1.msra.mxu0 0.0
        %1029 = vmatprep.subr.mxu0 0.0
        %1030 = vmatpush1.msra.mxu0 0.0
        %1031 = vmatprep.subr.mxu0 0.0
        %1032 = vmatpush1.msra.mxu0 0.0
        %1033 = vmatprep.subr.mxu0 0.0
        %1034 = vmatpush1.msra.mxu0 0.0
        %1035 = vmatprep.subr.mxu0 0.0
        %1036 = vmatpush1.msra.mxu0 0.0
        %1037 = vmatprep.subr.mxu0 0.0
        %1038 = vmatpush1.msra.mxu0 0.0
        %1039 = vmatprep.subr.mxu0 0.0
        %1040 = vmatpush1.msra.mxu0 0.0
        %1041 = vmatprep.subr.mxu0 0.0
        %1042 = vmatpush1.msra.mxu0 0.0
        %1043 = vmatprep.subr.mxu0 0.0
        %1044 = vmatpush1.msra.mxu0 0.0
        %1045 = vmatprep.subr.mxu0 0.0
        %1046 = vmatpush1.msra.mxu0 0.0
        %1047 = vmatprep.subr.mxu0 0.0
        %1048 = vmatpush1.msra.mxu0 0.0
        %1049 = vmatprep.subr.mxu0 0.0
        %1050 = vmatpush1.msra.mxu0 0.0
        %1051 = vmatprep.subr.mxu0 0.0
        %1052 = vmatpush1.msra.mxu0 0.0
        %1053 = vmatprep.subr.mxu0 0.0
        %1054 = vmatpush1.msra.mxu0 0.0
        %1055 = vmatprep.subr.mxu0 0.0
        %1056 = vmatpush1.msra.mxu0 0.0
        %1057 = vmatprep.subr.mxu0 0.0
        %1058 = vmatpush1.msra.mxu0 0.0
        %1059 = vmatprep.mubr.f32.mxu0 0.0
        %1060 = vmatmul.mubr.f32.gmra.mrb[0].mxu0 %v971
        %v1061 = vpop.f32.mrb[0].mxu0
        %v1062 = vadd.f32 %v993, %v1061
        %v1063 = vpop.f32.mrb[0].mxu0
        %1064 = vdwg.mxu0
        %v1065 = vmax.f32 %v1062, 0.0
        %v1066 = vld [vmem:[#allocation13] sm:$0xff]
        %v1067 = vld [vmem:[#allocation13 + $0x8] sm:$0xff]
        %v1068 = vld [vmem:[#allocation13 + $0x10] sm:$0xff]
        %v1069 = vld [vmem:[#allocation13 + $0x18] sm:$0xff]
        %v1070 = vld [vmem:[#allocation13 + $0x20] sm:$0xff]
        %v1071 = vld [vmem:[#allocation13 + $0x28] sm:$0xff]
        %v1072 = vld [vmem:[#allocation13 + $0x30] sm:$0xff]
        %v1073 = vld [vmem:[#allocation13 + $0x38] sm:$0xff]
        %v1074 = vld [vmem:[#allocation13 + $0x40] sm:$0xff]
        %v1075 = vld [vmem:[#allocation13 + $0x48] sm:$0xff]
        %v1076 = vld [vmem:[#allocation13 + $0x50] sm:$0xff]
        %v1077 = vld [vmem:[#allocation13 + $0x58] sm:$0xff]
        %v1078 = vld [vmem:[#allocation13 + $0x60] sm:$0xff]
        %v1079 = vld [vmem:[#allocation13 + $0x68] sm:$0xff]
        %v1080 = vld [vmem:[#allocation13 + $0x70] sm:$0xff]
        %v1081 = vld [vmem:[#allocation13 + $0x78] sm:$0xff]
        %v1082 = vld [vmem:[%s12] sm:$0x1]
        %v1084 = vlaneseq
        %v1085 = vshrl.u32 %v1084, 7
        %v1086 = vsub.s32 0, %v1085
        %v1087 = vrot.slane %v1082, %v1086
        %1089 = vmatprep.subr.mxu0 0.0
        %1090 = vmatpush1.msra.mxu0 %v1066
        %1091 = vmatprep.subr.mxu0 0.0
        %1092 = vmatpush1.msra.mxu0 %v1067
        %1093 = vmatprep.subr.mxu0 0.0
        %1094 = vmatpush1.msra.mxu0 %v1068
        %1095 = vmatprep.subr.mxu0 0.0
        %1096 = vmatpush1.msra.mxu0 %v1069
        %1097 = vmatprep.subr.mxu0 0.0
        %1098 = vmatpush1.msra.mxu0 %v1070
        %1099 = vmatprep.subr.mxu0 0.0
        %1100 = vmatpush1.msra.mxu0 %v1071
        %1101 = vmatprep.subr.mxu0 0.0
        %1102 = vmatpush1.msra.mxu0 %v1072
        %1103 = vmatprep.subr.mxu0 0.0
        %1104 = vmatpush1.msra.mxu0 %v1073
        %1105 = vmatprep.subr.mxu0 0.0
        %1106 = vmatpush1.msra.mxu0 %v1074
        %1107 = vmatprep.subr.mxu0 0.0
        %1108 = vmatpush1.msra.mxu0 %v1075
        %1109 = vmatprep.subr.mxu0 0.0
        %1110 = vmatpush1.msra.mxu0 %v1076
        %1111 = vmatprep.subr.mxu0 0.0
        %1112 = vmatpush1.msra.mxu0 %v1077
        %1113 = vmatprep.subr.mxu0 0.0
        %1114 = vmatpush1.msra.mxu0 %v1078
        %1115 = vmatprep.subr.mxu0 0.0
        %1116 = vmatpush1.msra.mxu0 %v1079
        %1117 = vmatprep.subr.mxu0 0.0
        %1118 = vmatpush1.msra.mxu0 %v1080
        %1119 = vmatprep.subr.mxu0 0.0
        %1120 = vmatpush1.msra.mxu0 %v1081
        %1121 = vmatprep.subr.mxu0 0.0
        %1122 = vmatpush1.msra.mxu0 0.0
        %1123 = vmatprep.subr.mxu0 0.0
        %1124 = vmatpush1.msra.mxu0 0.0
        %1125 = vmatprep.subr.mxu0 0.0
        %1126 = vmatpush1.msra.mxu0 0.0
        %1127 = vmatprep.subr.mxu0 0.0
        %1128 = vmatpush1.msra.mxu0 0.0
        %1129 = vmatprep.subr.mxu0 0.0
        %1130 = vmatpush1.msra.mxu0 0.0
        %1131 = vmatprep.subr.mxu0 0.0
        %1132 = vmatpush1.msra.mxu0 0.0
        %1133 = vmatprep.subr.mxu0 0.0
        %1134 = vmatpush1.msra.mxu0 0.0
        %1135 = vmatprep.subr.mxu0 0.0
        %1136 = vmatpush1.msra.mxu0 0.0
        %1137 = vmatprep.subr.mxu0 0.0
        %1138 = vmatpush1.msra.mxu0 0.0
        %1139 = vmatprep.subr.mxu0 0.0
        %1140 = vmatpush1.msra.mxu0 0.0
        %1141 = vmatprep.subr.mxu0 0.0
        %1142 = vmatpush1.msra.mxu0 0.0
        %1143 = vmatprep.subr.mxu0 0.0
        %1144 = vmatpush1.msra.mxu0 0.0
        %1145 = vmatprep.subr.mxu0 0.0
        %1146 = vmatpush1.msra.mxu0 0.0
        %1147 = vmatprep.subr.mxu0 0.0
        %1148 = vmatpush1.msra.mxu0 0.0
        %1149 = vmatprep.subr.mxu0 0.0
        %1150 = vmatpush1.msra.mxu0 0.0
        %1151 = vmatprep.subr.mxu0 0.0
        %1152 = vmatpush1.msra.mxu0 0.0
        %1153 = vmatprep.mubr.f32.mxu0 0.0
        %1154 = vmatmul.mubr.f32.gmra.mrb[0].mxu0 %v1065
        %v1155 = vpop.f32.mrb[0].mxu0
        %v1156 = vadd.f32 %v1087, %v1155
        %v1157 = vpop.f32.mrb[0].mxu0
        %1158 = vdwg.mxu0
        %v1159 = vadd.f32 %v970, %v1156
        %v1160 = vmax.f32 %v1159, 0.0
        %v1161 = vld [vmem:[%s13] sm:$0xff]
        %v1162 = vld [vmem:[%s13 + $0x8] sm:$0xff]
        %v1163 = vld [vmem:[%s13 + $0x10] sm:$0xff]
        %v1164 = vld [vmem:[%s13 + $0x18] sm:$0xff]
        %v1165 = vld [vmem:[%s13 + $0x20] sm:$0xff]
        %v1166 = vld [vmem:[%s13 + $0x28] sm:$0xff]
        %v1167 = vld [vmem:[%s13 + $0x30] sm:$0xff]
        %v1168 = vld [vmem:[%s13 + $0x38] sm:$0xff]
        %v1169 = vld [vmem:[%s13 + $0x40] sm:$0xff]
        %v1170 = vld [vmem:[%s13 + $0x48] sm:$0xff]
        %v1171 = vld [vmem:[%s13 + $0x50] sm:$0xff]
        %v1172 = vld [vmem:[%s13 + $0x58] sm:$0xff]
        %v1173 = vld [vmem:[%s13 + $0x60] sm:$0xff]
        %v1174 = vld [vmem:[%s13 + $0x68] sm:$0xff]
        %v1175 = vld [vmem:[%s13 + $0x70] sm:$0xff]
        %v1176 = vld [vmem:[%s13 + $0x78] sm:$0xff]
        %v1177 = vld [vmem:[%s14] sm:$0x1]
        %v1179 = vlaneseq
        %v1180 = vshrl.u32 %v1179, 7
        %v1181 = vsub.s32 0, %v1180
        %v1182 = vrot.slane %v1177, %v1181
        %1184 = vmatprep.subr.mxu0 0.0
        %1185 = vmatpush1.msra.mxu0 %v1161
        %1186 = vmatprep.subr.mxu0 0.0
        %1187 = vmatpush1.msra.mxu0 %v1162
        %1188 = vmatprep.subr.mxu0 0.0
        %1189 = vmatpush1.msra.mxu0 %v1163
        %1190 = vmatprep.subr.mxu0 0.0
        %1191 = vmatpush1.msra.mxu0 %v1164
        %1192 = vmatprep.subr.mxu0 0.0
        %1193 = vmatpush1.msra.mxu0 %v1165
        %1194 = vmatprep.subr.mxu0 0.0
        %1195 = vmatpush1.msra.mxu0 %v1166
        %1196 = vmatprep.subr.mxu0 0.0
        %1197 = vmatpush1.msra.mxu0 %v1167
        %1198 = vmatprep.subr.mxu0 0.0
        %1199 = vmatpush1.msra.mxu0 %v1168
        %1200 = vmatprep.subr.mxu0 0.0
        %1201 = vmatpush1.msra.mxu0 %v1169
        %1202 = vmatprep.subr.mxu0 0.0
        %1203 = vmatpush1.msra.mxu0 %v1170
        %1204 = vmatprep.subr.mxu0 0.0
        %1205 = vmatpush1.msra.mxu0 %v1171
        %1206 = vmatprep.subr.mxu0 0.0
        %1207 = vmatpush1.msra.mxu0 %v1172
        %1208 = vmatprep.subr.mxu0 0.0
        %1209 = vmatpush1.msra.mxu0 %v1173
        %1210 = vmatprep.subr.mxu0 0.0
        %1211 = vmatpush1.msra.mxu0 %v1174
        %1212 = vmatprep.subr.mxu0 0.0
        %1213 = vmatpush1.msra.mxu0 %v1175
        %1214 = vmatprep.subr.mxu0 0.0
        %1215 = vmatpush1.msra.mxu0 %v1176
        %1216 = vmatprep.subr.mxu0 0.0
        %1217 = vmatpush1.msra.mxu0 0.0
        %1218 = vmatprep.subr.mxu0 0.0
        %1219 = vmatpush1.msra.mxu0 0.0
        %1220 = vmatprep.subr.mxu0 0.0
        %1221 = vmatpush1.msra.mxu0 0.0
        %1222 = vmatprep.subr.mxu0 0.0
        %1223 = vmatpush1.msra.mxu0 0.0
        %1224 = vmatprep.subr.mxu0 0.0
        %1225 = vmatpush1.msra.mxu0 0.0
        %1226 = vmatprep.subr.mxu0 0.0
        %1227 = vmatpush1.msra.mxu0 0.0
        %1228 = vmatprep.subr.mxu0 0.0
        %1229 = vmatpush1.msra.mxu0 0.0
        %1230 = vmatprep.subr.mxu0 0.0
        %1231 = vmatpush1.msra.mxu0 0.0
        %1232 = vmatprep.subr.mxu0 0.0
        %1233 = vmatpush1.msra.mxu0 0.0
        %1234 = vmatprep.subr.mxu0 0.0
        %1235 = vmatpush1.msra.mxu0 0.0
        %1236 = vmatprep.subr.mxu0 0.0
        %1237 = vmatpush1.msra.mxu0 0.0
        %1238 = vmatprep.subr.mxu0 0.0
        %1239 = vmatpush1.msra.mxu0 0.0
        %1240 = vmatprep.subr.mxu0 0.0
        %1241 = vmatpush1.msra.mxu0 0.0
        %1242 = vmatprep.subr.mxu0 0.0
        %1243 = vmatpush1.msra.mxu0 0.0
        %1244 = vmatprep.subr.mxu0 0.0
        %1245 = vmatpush1.msra.mxu0 0.0
        %1246 = vmatprep.subr.mxu0 0.0
        %1247 = vmatpush1.msra.mxu0 0.0
        %1248 = vmatprep.mubr.f32.mxu0 0.0
        %1249 = vmatmul.mubr.f32.gmra.mrb[0].mxu0 %v1160
        %v1250 = vpop.f32.mrb[0].mxu0
        %v1251 = vadd.f32 %v1182, %v1250
        %v1252 = vpop.f32.mrb[0].mxu0
        %1253 = vdwg.mxu0
        %vm1254 = vcmask 130048
        %1255 = vst.msk [vmem:[%s616] sm:$0xff] %vm1254, %v1251
        %s1256 = sand.u32 %s370, 1
        %s1257 = scalar_lea.sflag [#allocation4], %s1256
        %s1258 = sand.u32 %s370, 1
        %s1259 = smul.addr %s1258, 8
        %s1260 = scalar_lea.vmem [#allocation14], %s1259
        // Predicated region
        $region109: #{tpu_custom_call.1} parent=79 // pred_check
          %p1261 = pneg %p380
        $region110: #{tpu_custom_call.1} parent=79 // pred_check_branch
          %1263 = sbr.rel (%p1261) target = $region112
        $region111: #{tpu_custom_call.1} parent=79 // pred_region
          %s1265 = ssub.s32 128, 128
          %1266 = vsyncadd %s1257, %s1265
          %s1267 = smul.addr %s37, 128
          %s1268 = scalar_lea.hbm %s15, %s1267
          %s1270 = sshll.u32 %s1260, 4
          %s1271 = int_to_ptr.vmem [resolvable:$true] %s1270
          %1273 = dma.vmem_to_hbm [thread:$0]  %s1271, 128, %s1268, %s1257
        $region112: #{tpu_custom_call.1} parent=79 // pred_fallthru
          _
      $region80: #{tpu_custom_call.1} parent=5 // pred_fallthru
        _
      %p1274 = scmp.le.s32.totalorder 2, %s32
      // Predicated region
      $region113: #{tpu_custom_call.1} parent=5 // pred_check
        %p1275 = pneg %p1274
      $region114: #{tpu_custom_call.1} parent=5 // pred_check_branch
        %1277 = sbr.rel (%p1275) target = $region116
      $region115: #{tpu_custom_call.1} parent=5 // pred_region
        %s1278 = ssub.s32 %s32, 2
        // Predicated region
        $region117: #{tpu_custom_call.1} parent=115 // pred_check
          %p1279 = pneg %p386
        $region118: #{tpu_custom_call.1} parent=115 // pred_check_branch
          %1281 = sbr.rel (%p1279) target = $region120
        $region119: #{tpu_custom_call.1} parent=115 // pred_region
          %s1282 = sand.u32 %s371, 1
          %s1283 = scalar_lea.sflag [#allocation4], %s1282
          %s1284 = sand.u32 %s371, 1
          %s1285 = smul.addr %s1284, 8
          %s1286 = scalar_lea.vmem [#allocation14], %s1285
          %1287 = dma.done %s1283, 128
        $region120: #{tpu_custom_call.1} parent=115 // pred_fallthru
          _
      $region116: #{tpu_custom_call.1} parent=5 // pred_fallthru
        _
    $region6: #{tpu_custom_call.1} parent=1 // loop_footer
      %s36 = sadd.s32 1, %s32
    $region7: #{tpu_custom_call.1} parent=1 // loop_footer_branch
      %31 = sbr.rel target = $region3
    $region8: #{tpu_custom_call.1} parent=1 // loop_exit
      _
    %1288 = vsyncpa [#allocation3], 1
    %s1289 = scalar_lea.sflag [#allocation3], 1
    %1290 = vsyncpa %s1289, 1
    %1291 = vsyncpa [#allocation6], 1
    %s1292 = scalar_lea.sflag [#allocation6], 1
    %1293 = vsyncpa %s1292, 1
    %1294 = vsyncpa [#allocation9], 1
    %1295 = vsyncpa [#allocation12], 1
    %1296 = vsyncpa [#allocation4], 1
    %s1297 = scalar_lea.sflag [#allocation4], 1
    %1298 = vsyncpa %s1297, 1

</llo_original>
